<compile_context>
chip_gen: v7x
topology: tpu7x:2x2x1
jax: 0.10.0
libtpu: 0.0.40
codegen_flags: <defaults>
</compile_context>

<pallas_src>
import jax
import jax.numpy as jnp
from jax.experimental import pallas as pl
from jax.experimental.pallas import tpu as pltpu

CLAMP = 2.0  # soft-clamp constant for the scale, as in FrEIA GLOW coupling


# ----------------------------- Pallas kernel -------------------------------
def _inn_fused_kernel(x_ref, p_ref, w1_ref, b1_ref, w2_ref, b2_ref,
                      y_ref, ld_ref):
    """Single invocation; all weights VMEM-resident; blocks unrolled.

    Per block b (statically unrolled):
        x_perm = x @ P_b                 (fixed per-block permutation, one-hot)
        x1, x2 = split(x_perm)
        h  = relu(x1 @ w1_b + b1_b)
        [s_raw | t] = h @ w2_b + b2_b
        s  = CLAMP * tanh(s_raw / CLAMP)
        x  = [x1 | x2 * exp(s) + t]
        log_jac_det += sum_j s[:, j]
    State lives directly in y_ref; log|det J| accumulates in ld_ref.
    """
    n_blk = p_ref.shape[0]
    half = w1_ref.shape[1]

    y_ref[...] = x_ref[...]
    ld_ref[...] = jnp.zeros_like(ld_ref)

    for b in range(n_blk):                      # static unroll (n_blk small)
        x = y_ref[...]                          # [B, D] f32, resident state
        p = p_ref[b].astype(jnp.float32)        # exact 0/1 bf16 -> f32 cast
        xp = jnp.dot(x, p, preferred_element_type=jnp.float32)   # [x1 | x2]
        x1 = xp[:, :half]
        x2 = xp[:, half:]

        h = jnp.maximum(
            jnp.dot(x1, w1_ref[b], preferred_element_type=jnp.float32)
            + b1_ref[b], 0.0)
        st = (jnp.dot(h, w2_ref[b], preferred_element_type=jnp.float32)
              + b2_ref[b])

        s = CLAMP * jnp.tanh(st[:, :half] / CLAMP)   # EUP tanh, soft clamp
        t = st[:, half:]
        y2 = x2 * jnp.exp(s) + t                      # VPU affine

        # Aligned slice stores into the resident output (no concatenate).
        y_ref[:, :half] = x1
        y_ref[:, half:] = y2
        ld_ref[...] = ld_ref[...] + jnp.sum(s, axis=1, keepdims=True)


# ----------------------------- fused wrapper --------------------------------
def inn_forward_fused(x, packed):
    """Run all coupling blocks in a single, grid-less pallas_call."""
    p_all, w1_all, b1_all, w2_all, b2_all = packed
    B, D = x.shape
    n_blk = p_all.shape[0]
    half = w1_all.shape[1]
    hidden = w1_all.shape[2]

    # Advisory cost hint for the XLA scheduler.
    flops = n_blk * (2 * B * D * D              # x @ P
                     + 2 * B * half * hidden    # x1 @ w1
                     + 2 * B * hidden * D)      # h @ w2
    transcendentals = n_blk * B * half * 2      # tanh + exp
    bytes_accessed = (2 * p_all.size            # bf16 permutations
                      + 4 * (w1_all.size + b1_all.size + w2_all.size
                             + b2_all.size + x.size + B * D + B))

    y, ld = pl.pallas_call(
        _inn_fused_kernel,
        out_shape=(jax.ShapeDtypeStruct((B, D), jnp.float32),
                   jax.ShapeDtypeStruct((B, 1), jnp.float32)),
        compiler_params=pltpu.CompilerParams(
            # Total resident need is ~1.3 MiB; 32 MiB leaves ample headroom and
            # stays within scoped/physical limits on v5e, v6e and v7x.
            vmem_limit_bytes=32 * 1024 * 1024),
        cost_estimate=pl.CostEstimate(flops=flops,
                                      transcendentals=transcendentals,
                                      bytes_accessed=bytes_accessed),
    )(x, p_all, w1_all, b1_all, w2_all, b2_all)
    return y, ld[:, 0]


# ----------------------------- INN assembly --------------------------------
def init_inn_params(key, D, hidden, n_blocks):
    """Deterministic synthetic weights for the reversible part."""
    half = D // 2
    params = []
    for _ in range(n_blocks):
        key, k1, k2, kp = jax.random.split(key, 4)
        w1 = (jax.random.normal(k1, (half, hidden), jnp.float32)
              * (1.0 / jnp.sqrt(half)))
        b1 = jnp.zeros((1, hidden), jnp.float32)
        w2 = (jax.random.normal(k2, (hidden, D), jnp.float32)
              * (0.1 / jnp.sqrt(hidden)))
        b2 = jnp.zeros((1, D), jnp.float32)
        perm = jax.random.permutation(kp, D)     # fixed channel permutation
        params.append((w1, b1, w2, b2, perm))
    return params


def pack_params(params, D):
    """Stack per-block weights for the fused kernel.

    x @ P == x[:, perm]  with  P[perm[j], j] = 1  (same convention as jnp.take).
    P holds exactly 0/1, so storing it in bf16 is lossless and halves its HBM
    footprint; w1 is kept unfolded ([half, hidden]) and in f32."""
    cols = jnp.arange(D)
    p_list, w1s, b1s, w2s, b2s = [], [], [], [], []
    for (w1, b1, w2, b2, perm) in params:
        P = jnp.zeros((D, D), jnp.float32).at[perm, cols].set(1.0)
        p_list.append(P.astype(jnp.bfloat16))    # exact cast (0/1 values)
        w1s.append(w1)
        b1s.append(b1)
        w2s.append(w2)
        b2s.append(b2)
    return (jnp.stack(p_list), jnp.stack(w1s), jnp.stack(b1s),
            jnp.stack(w2s), jnp.stack(b2s))


@jax.jit
def my_model_forward(x_img, packed):
    """MyModel.forward: x, log_jac_det = reversible_part(x); return both."""
    B = x_img.shape[0]
    x = x_img.reshape(B, -1).astype(jnp.float32)   # glue: NCHW -> [B, D]
    return inn_forward_fused(x, packed)


# TODO(synk): invert_model (rev=True path) is not exercised by forward();
# it would be the analytic inverse of each coupling block in reverse order.


# ------------------------- pure-JAX reference ------------------------------
def _reference_forward(x_img, params):
    B = x_img.shape[0]
    x = x_img.reshape(B, -1).astype(jnp.float32)
    ld = jnp.zeros((B,), jnp.float32)
    for (w1, b1, w2, b2, perm) in params:
        x = jnp.take(x, perm, axis=1)
        half = x.shape[1] // 2
        x1, x2 = x[:, :half], x[:, half:]
        h = jnp.maximum(x1 @ w1 + b1, 0.0)
        st = h @ w2 + b2
        s = CLAMP * jnp.tanh(st[:, :half] / CLAMP)
        t = st[:, half:]
        y2 = x2 * jnp.exp(s) + t
        x = jnp.concatenate([x1, y2], axis=1)
        ld = ld + jnp.sum(s, axis=1)
    return x, ld


# --------------------------------- main -------------------------------------
if __name__ == "__main__":
    key = jax.random.PRNGKey(0)
    kx, kp = jax.random.split(key)

    B, C, H, W = 2, 4, 8, 8            # small NCHW input
    D = C * H * W                       # 256 features, half = 128 (lane-aligned)
    HIDDEN = 128
    N_BLOCKS = 4

    x_img = jax.random.normal(kx, (B, C, H, W), jnp.float32)
    params = init_inn_params(kp, D, HIDDEN, N_BLOCKS)
    packed = pack_params(params, D)

    y, log_jac_det = my_model_forward(x_img, packed)
    y = jax.block_until_ready(y)
    log_jac_det = jax.block_until_ready(log_jac_det)

    y_ref, ld_ref = _reference_forward(x_img, params)
    assert y.shape == (B, D) and log_jac_det.shape == (B,)
    assert jnp.all(jnp.isfinite(y)) and jnp.all(jnp.isfinite(log_jac_det))
    assert jnp.allclose(y, y_ref, atol=1e-3, rtol=1e-3)
    assert jnp.allclose(log_jac_det, ld_ref, atol=1e-3, rtol=1e-3)

    print("KERNEL_OK")
</pallas_src>

<mosaic_0001>
module attributes {stable_mosaic.version = 11 : i64} {
  func.func @_inn_fused_kernel(%arg0: memref<2x256xf32, #tpu.memory_space<vmem>>, %arg1: memref<4x256x256xbf16, #tpu.memory_space<vmem>>, %arg2: memref<4x128x128xf32, #tpu.memory_space<vmem>>, %arg3: memref<4x1x128xf32, #tpu.memory_space<vmem>>, %arg4: memref<4x128x256xf32, #tpu.memory_space<vmem>>, %arg5: memref<4x1x256xf32, #tpu.memory_space<vmem>>, %arg6: memref<2x256xf32, #tpu.memory_space<vmem>>, %arg7: memref<2x1xf32, #tpu.memory_space<vmem>>) attributes {dimension_semantics = [], scalar_prefetch = 0 : i64, scratch_operands = 0 : i64, tpu.core_type = #tpu.core_type<tc>} {
    %c0 = arith.constant 0 : index
    %c0_0 = arith.constant 0 : index
    %0 = vector.load %arg0[%c0, %c0_0] : memref<2x256xf32, #tpu.memory_space<vmem>>, vector<2x256xf32>
    %c0_1 = arith.constant 0 : index
    %c0_2 = arith.constant 0 : index
    %1 = vector.load %arg6[%c0_1, %c0_2] : memref<2x256xf32, #tpu.memory_space<vmem>>, vector<2x256xf32>
    tpu.vector_store %arg6[%c0_1, %c0_2], %0 {strides = array<i32>} : memref<2x256xf32, #tpu.memory_space<vmem>>, vector<2x256xf32>,
    %cst = arith.constant 0.000000e+00 : f32
    %2 = vector.broadcast %cst : f32 to vector<2x1xf32>
    %c0_3 = arith.constant 0 : index
    %c0_4 = arith.constant 0 : index
    %3 = vector.load %arg7[%c0_3, %c0_4] : memref<2x1xf32, #tpu.memory_space<vmem>>, vector<2x1xf32>
    tpu.vector_store %arg7[%c0_3, %c0_4], %2 {strides = array<i32>} : memref<2x1xf32, #tpu.memory_space<vmem>>, vector<2x1xf32>,
    %c0_5 = arith.constant 0 : index
    %c0_6 = arith.constant 0 : index
    %4 = vector.load %arg6[%c0_5, %c0_6] : memref<2x256xf32, #tpu.memory_space<vmem>>, vector<2x256xf32>
    %c0_7 = arith.constant 0 : index
    %c0_8 = arith.constant 0 : index
    %c0_9 = arith.constant 0 : index
    %5 = vector.load %arg1[%c0_7, %c0_8, %c0_9] : memref<4x256x256xbf16, #tpu.memory_space<vmem>>, vector<1x256x256xbf16>
    %6 = vector.shape_cast %5 : vector<1x256x256xbf16> to vector<256x256xbf16>
    %7 = arith.extf %6 : vector<256x256xbf16> to vector<256x256xf32>
    %cst_10 = arith.constant dense<0.000000e+00> : vector<2x256xf32>
    %8 = tpu.matmul %4, %7, %cst_10 {dimension_numbers = #tpu.dot_dimension_numbers<[1], [0], [0], [1], [0, 0, 1, 1], [], []>} : vector<2x256xf32>, vector<256x256xf32>, vector<2x256xf32> -> vector<2x256xf32>
    %9 = vector.extract_strided_slice %8 {offsets = [0, 0], sizes = [2, 128], strides = [1, 1]} : vector<2x256xf32> to vector<2x128xf32>
    %10 = vector.extract_strided_slice %8 {offsets = [0, 128], sizes = [2, 128], strides = [1, 1]} : vector<2x256xf32> to vector<2x128xf32>
    %c0_11 = arith.constant 0 : index
    %c0_12 = arith.constant 0 : index
    %c0_13 = arith.constant 0 : index
    %11 = vector.load %arg2[%c0_11, %c0_12, %c0_13] : memref<4x128x128xf32, #tpu.memory_space<vmem>>, vector<1x128x128xf32>
    %12 = vector.shape_cast %11 : vector<1x128x128xf32> to vector<128x128xf32>
    %cst_14 = arith.constant dense<0.000000e+00> : vector<2x128xf32>
    %13 = tpu.matmul %9, %12, %cst_14 {dimension_numbers = #tpu.dot_dimension_numbers<[1], [0], [0], [1], [0, 0, 1, 1], [], []>} : vector<2x128xf32>, vector<128x128xf32>, vector<2x128xf32> -> vector<2x128xf32>
    %c0_15 = arith.constant 0 : index
    %c0_16 = arith.constant 0 : index
    %c0_17 = arith.constant 0 : index
    %14 = vector.load %arg3[%c0_15, %c0_16, %c0_17] : memref<4x1x128xf32, #tpu.memory_space<vmem>>, vector<1x1x128xf32>
    %15 = vector.shape_cast %14 : vector<1x1x128xf32> to vector<1x128xf32>
    %16 = vector.broadcast %15 : vector<1x128xf32> to vector<2x128xf32>
    %17 = arith.addf %13, %16 : vector<2x128xf32>
    %cst_18 = arith.constant 0.000000e+00 : f32
    %18 = vector.broadcast %cst_18 : f32 to vector<2x128xf32>
    %19 = arith.maximumf %17, %18 : vector<2x128xf32>
    %c0_19 = arith.constant 0 : index
    %c0_20 = arith.constant 0 : index
    %c0_21 = arith.constant 0 : index
    %20 = vector.load %arg4[%c0_19, %c0_20, %c0_21] : memref<4x128x256xf32, #tpu.memory_space<vmem>>, vector<1x128x256xf32>
    %21 = vector.shape_cast %20 : vector<1x128x256xf32> to vector<128x256xf32>
    %cst_22 = arith.constant dense<0.000000e+00> : vector<2x256xf32>
    %22 = tpu.matmul %19, %21, %cst_22 {dimension_numbers = #tpu.dot_dimension_numbers<[1], [0], [0], [1], [0, 0, 1, 1], [], []>} : vector<2x128xf32>, vector<128x256xf32>, vector<2x256xf32> -> vector<2x256xf32>
    %c0_23 = arith.constant 0 : index
    %c0_24 = arith.constant 0 : index
    %c0_25 = arith.constant 0 : index
    %23 = vector.load %arg5[%c0_23, %c0_24, %c0_25] : memref<4x1x256xf32, #tpu.memory_space<vmem>>, vector<1x1x256xf32>
    %24 = vector.shape_cast %23 : vector<1x1x256xf32> to vector<1x256xf32>
    %25 = vector.broadcast %24 : vector<1x256xf32> to vector<2x256xf32>
    %26 = arith.addf %22, %25 : vector<2x256xf32>
    %27 = vector.extract_strided_slice %26 {offsets = [0, 0], sizes = [2, 128], strides = [1, 1]} : vector<2x256xf32> to vector<2x128xf32>
    %cst_26 = arith.constant 2.000000e+00 : f32
    %28 = vector.broadcast %cst_26 : f32 to vector<2x128xf32>
    %29 = arith.divf %27, %28 : vector<2x128xf32>
    %30 = math.tanh %29 : vector<2x128xf32>
    %cst_27 = arith.constant 2.000000e+00 : f32
    %31 = vector.broadcast %cst_27 : f32 to vector<2x128xf32>
    %32 = arith.mulf %31, %30 : vector<2x128xf32>
    %33 = vector.extract_strided_slice %26 {offsets = [0, 128], sizes = [2, 128], strides = [1, 1]} : vector<2x256xf32> to vector<2x128xf32>
    %34 = math.exp %32 : vector<2x128xf32>
    %35 = arith.mulf %10, %34 : vector<2x128xf32>
    %36 = arith.addf %35, %33 : vector<2x128xf32>
    %c0_28 = arith.constant 0 : index
    %c0_29 = arith.constant 0 : index
    %37 = vector.load %arg6[%c0_28, %c0_29] : memref<2x256xf32, #tpu.memory_space<vmem>>, vector<2x128xf32>
    tpu.vector_store %arg6[%c0_28, %c0_29], %9 {strides = array<i32>} : memref<2x256xf32, #tpu.memory_space<vmem>>, vector<2x128xf32>,
    %c0_30 = arith.constant 0 : index
    %c128 = arith.constant 128 : index
    %38 = vector.load %arg6[%c0_30, %c128] : memref<2x256xf32, #tpu.memory_space<vmem>>, vector<2x128xf32>
    tpu.vector_store %arg6[%c0_30, %c128], %36 {strides = array<i32>} : memref<2x256xf32, #tpu.memory_space<vmem>>, vector<2x128xf32>,
    %c0_31 = arith.constant 0 : index
    %c0_32 = arith.constant 0 : index
    %39 = vector.load %arg7[%c0_31, %c0_32] : memref<2x1xf32, #tpu.memory_space<vmem>>, vector<2x1xf32>
    %cst_33 = arith.constant dense<0.000000e+00> : vector<2xf32>
    %40 = vector.multi_reduction <add>, %32, %cst_33 [1] : vector<2x128xf32> to vector<2xf32>
    %41 = vector.shape_cast %40 : vector<2xf32> to vector<2x1xf32>
    %42 = arith.addf %39, %41 : vector<2x1xf32>
    %c0_34 = arith.constant 0 : index
    %c0_35 = arith.constant 0 : index
    %43 = vector.load %arg7[%c0_34, %c0_35] : memref<2x1xf32, #tpu.memory_space<vmem>>, vector<2x1xf32>
    tpu.vector_store %arg7[%c0_34, %c0_35], %42 {strides = array<i32>} : memref<2x1xf32, #tpu.memory_space<vmem>>, vector<2x1xf32>,
    %c0_36 = arith.constant 0 : index
    %c0_37 = arith.constant 0 : index
    %44 = vector.load %arg6[%c0_36, %c0_37] : memref<2x256xf32, #tpu.memory_space<vmem>>, vector<2x256xf32>
    %c1 = arith.constant 1 : index
    %c0_38 = arith.constant 0 : index
    %c0_39 = arith.constant 0 : index
    %45 = vector.load %arg1[%c1, %c0_38, %c0_39] : memref<4x256x256xbf16, #tpu.memory_space<vmem>>, vector<1x256x256xbf16>
    %46 = vector.shape_cast %45 : vector<1x256x256xbf16> to vector<256x256xbf16>
    %47 = arith.extf %46 : vector<256x256xbf16> to vector<256x256xf32>
    %cst_40 = arith.constant dense<0.000000e+00> : vector<2x256xf32>
    %48 = tpu.matmul %44, %47, %cst_40 {dimension_numbers = #tpu.dot_dimension_numbers<[1], [0], [0], [1], [0, 0, 1, 1], [], []>} : vector<2x256xf32>, vector<256x256xf32>, vector<2x256xf32> -> vector<2x256xf32>
    %49 = vector.extract_strided_slice %48 {offsets = [0, 0], sizes = [2, 128], strides = [1, 1]} : vector<2x256xf32> to vector<2x128xf32>
    %50 = vector.extract_strided_slice %48 {offsets = [0, 128], sizes = [2, 128], strides = [1, 1]} : vector<2x256xf32> to vector<2x128xf32>
    %c1_41 = arith.constant 1 : index
    %c0_42 = arith.constant 0 : index
    %c0_43 = arith.constant 0 : index
    %51 = vector.load %arg2[%c1_41, %c0_42, %c0_43] : memref<4x128x128xf32, #tpu.memory_space<vmem>>, vector<1x128x128xf32>
    %52 = vector.shape_cast %51 : vector<1x128x128xf32> to vector<128x128xf32>
    %cst_44 = arith.constant dense<0.000000e+00> : vector<2x128xf32>
    %53 = tpu.matmul %49, %52, %cst_44 {dimension_numbers = #tpu.dot_dimension_numbers<[1], [0], [0], [1], [0, 0, 1, 1], [], []>} : vector<2x128xf32>, vector<128x128xf32>, vector<2x128xf32> -> vector<2x128xf32>
    %c1_45 = arith.constant 1 : index
    %c0_46 = arith.constant 0 : index
    %c0_47 = arith.constant 0 : index
    %54 = vector.load %arg3[%c1_45, %c0_46, %c0_47] : memref<4x1x128xf32, #tpu.memory_space<vmem>>, vector<1x1x128xf32>
    %55 = vector.shape_cast %54 : vector<1x1x128xf32> to vector<1x128xf32>
    %56 = vector.broadcast %55 : vector<1x128xf32> to vector<2x128xf32>
    %57 = arith.addf %53, %56 : vector<2x128xf32>
    %cst_48 = arith.constant 0.000000e+00 : f32
    %58 = vector.broadcast %cst_48 : f32 to vector<2x128xf32>
    %59 = arith.maximumf %57, %58 : vector<2x128xf32>
    %c1_49 = arith.constant 1 : index
    %c0_50 = arith.constant 0 : index
    %c0_51 = arith.constant 0 : index
    %60 = vector.load %arg4[%c1_49, %c0_50, %c0_51] : memref<4x128x256xf32, #tpu.memory_space<vmem>>, vector<1x128x256xf32>
    %61 = vector.shape_cast %60 : vector<1x128x256xf32> to vector<128x256xf32>
    %cst_52 = arith.constant dense<0.000000e+00> : vector<2x256xf32>
    %62 = tpu.matmul %59, %61, %cst_52 {dimension_numbers = #tpu.dot_dimension_numbers<[1], [0], [0], [1], [0, 0, 1, 1], [], []>} : vector<2x128xf32>, vector<128x256xf32>, vector<2x256xf32> -> vector<2x256xf32>
    %c1_53 = arith.constant 1 : index
    %c0_54 = arith.constant 0 : index
    %c0_55 = arith.constant 0 : index
    %63 = vector.load %arg5[%c1_53, %c0_54, %c0_55] : memref<4x1x256xf32, #tpu.memory_space<vmem>>, vector<1x1x256xf32>
    %64 = vector.shape_cast %63 : vector<1x1x256xf32> to vector<1x256xf32>
    %65 = vector.broadcast %64 : vector<1x256xf32> to vector<2x256xf32>
    %66 = arith.addf %62, %65 : vector<2x256xf32>
    %67 = vector.extract_strided_slice %66 {offsets = [0, 0], sizes = [2, 128], strides = [1, 1]} : vector<2x256xf32> to vector<2x128xf32>
    %cst_56 = arith.constant 2.000000e+00 : f32
    %68 = vector.broadcast %cst_56 : f32 to vector<2x128xf32>
    %69 = arith.divf %67, %68 : vector<2x128xf32>
    %70 = math.tanh %69 : vector<2x128xf32>
    %cst_57 = arith.constant 2.000000e+00 : f32
    %71 = vector.broadcast %cst_57 : f32 to vector<2x128xf32>
    %72 = arith.mulf %71, %70 : vector<2x128xf32>
    %73 = vector.extract_strided_slice %66 {offsets = [0, 128], sizes = [2, 128], strides = [1, 1]} : vector<2x256xf32> to vector<2x128xf32>
    %74 = math.exp %72 : vector<2x128xf32>
    %75 = arith.mulf %50, %74 : vector<2x128xf32>
    %76 = arith.addf %75, %73 : vector<2x128xf32>
    %c0_58 = arith.constant 0 : index
    %c0_59 = arith.constant 0 : index
    %77 = vector.load %arg6[%c0_58, %c0_59] : memref<2x256xf32, #tpu.memory_space<vmem>>, vector<2x128xf32>
    tpu.vector_store %arg6[%c0_58, %c0_59], %49 {strides = array<i32>} : memref<2x256xf32, #tpu.memory_space<vmem>>, vector<2x128xf32>,
    %c0_60 = arith.constant 0 : index
    %c128_61 = arith.constant 128 : index
    %78 = vector.load %arg6[%c0_60, %c128_61] : memref<2x256xf32, #tpu.memory_space<vmem>>, vector<2x128xf32>
    tpu.vector_store %arg6[%c0_60, %c128_61], %76 {strides = array<i32>} : memref<2x256xf32, #tpu.memory_space<vmem>>, vector<2x128xf32>,
    %c0_62 = arith.constant 0 : index
    %c0_63 = arith.constant 0 : index
    %79 = vector.load %arg7[%c0_62, %c0_63] : memref<2x1xf32, #tpu.memory_space<vmem>>, vector<2x1xf32>
    %cst_64 = arith.constant dense<0.000000e+00> : vector<2xf32>
    %80 = vector.multi_reduction <add>, %72, %cst_64 [1] : vector<2x128xf32> to vector<2xf32>
    %81 = vector.shape_cast %80 : vector<2xf32> to vector<2x1xf32>
    %82 = arith.addf %79, %81 : vector<2x1xf32>
    %c0_65 = arith.constant 0 : index
    %c0_66 = arith.constant 0 : index
    %83 = vector.load %arg7[%c0_65, %c0_66] : memref<2x1xf32, #tpu.memory_space<vmem>>, vector<2x1xf32>
    tpu.vector_store %arg7[%c0_65, %c0_66], %82 {strides = array<i32>} : memref<2x1xf32, #tpu.memory_space<vmem>>, vector<2x1xf32>,
    %c0_67 = arith.constant 0 : index
    %c0_68 = arith.constant 0 : index
    %84 = vector.load %arg6[%c0_67, %c0_68] : memref<2x256xf32, #tpu.memory_space<vmem>>, vector<2x256xf32>
    %c2 = arith.constant 2 : index
    %c0_69 = arith.constant 0 : index
    %c0_70 = arith.constant 0 : index
    %85 = vector.load %arg1[%c2, %c0_69, %c0_70] : memref<4x256x256xbf16, #tpu.memory_space<vmem>>, vector<1x256x256xbf16>
    %86 = vector.shape_cast %85 : vector<1x256x256xbf16> to vector<256x256xbf16>
    %87 = arith.extf %86 : vector<256x256xbf16> to vector<256x256xf32>
    %cst_71 = arith.constant dense<0.000000e+00> : vector<2x256xf32>
    %88 = tpu.matmul %84, %87, %cst_71 {dimension_numbers = #tpu.dot_dimension_numbers<[1], [0], [0], [1], [0, 0, 1, 1], [], []>} : vector<2x256xf32>, vector<256x256xf32>, vector<2x256xf32> -> vector<2x256xf32>
    %89 = vector.extract_strided_slice %88 {offsets = [0, 0], sizes = [2, 128], strides = [1, 1]} : vector<2x256xf32> to vector<2x128xf32>
    %90 = vector.extract_strided_slice %88 {offsets = [0, 128], sizes = [2, 128], strides = [1, 1]} : vector<2x256xf32> to vector<2x128xf32>
    %c2_72 = arith.constant 2 : index
    %c0_73 = arith.constant 0 : index
    %c0_74 = arith.constant 0 : index
    %91 = vector.load %arg2[%c2_72, %c0_73, %c0_74] : memref<4x128x128xf32, #tpu.memory_space<vmem>>, vector<1x128x128xf32>
    %92 = vector.shape_cast %91 : vector<1x128x128xf32> to vector<128x128xf32>
    %cst_75 = arith.constant dense<0.000000e+00> : vector<2x128xf32>
    %93 = tpu.matmul %89, %92, %cst_75 {dimension_numbers = #tpu.dot_dimension_numbers<[1], [0], [0], [1], [0, 0, 1, 1], [], []>} : vector<2x128xf32>, vector<128x128xf32>, vector<2x128xf32> -> vector<2x128xf32>
    %c2_76 = arith.constant 2 : index
    %c0_77 = arith.constant 0 : index
    %c0_78 = arith.constant 0 : index
    %94 = vector.load %arg3[%c2_76, %c0_77, %c0_78] : memref<4x1x128xf32, #tpu.memory_space<vmem>>, vector<1x1x128xf32>
    %95 = vector.shape_cast %94 : vector<1x1x128xf32> to vector<1x128xf32>
    %96 = vector.broadcast %95 : vector<1x128xf32> to vector<2x128xf32>
    %97 = arith.addf %93, %96 : vector<2x128xf32>
    %cst_79 = arith.constant 0.000000e+00 : f32
    %98 = vector.broadcast %cst_79 : f32 to vector<2x128xf32>
    %99 = arith.maximumf %97, %98 : vector<2x128xf32>
    %c2_80 = arith.constant 2 : index
    %c0_81 = arith.constant 0 : index
    %c0_82 = arith.constant 0 : index
    %100 = vector.load %arg4[%c2_80, %c0_81, %c0_82] : memref<4x128x256xf32, #tpu.memory_space<vmem>>, vector<1x128x256xf32>
    %101 = vector.shape_cast %100 : vector<1x128x256xf32> to vector<128x256xf32>
    %cst_83 = arith.constant dense<0.000000e+00> : vector<2x256xf32>
    %102 = tpu.matmul %99, %101, %cst_83 {dimension_numbers = #tpu.dot_dimension_numbers<[1], [0], [0], [1], [0, 0, 1, 1], [], []>} : vector<2x128xf32>, vector<128x256xf32>, vector<2x256xf32> -> vector<2x256xf32>
    %c2_84 = arith.constant 2 : index
    %c0_85 = arith.constant 0 : index
    %c0_86 = arith.constant 0 : index
    %103 = vector.load %arg5[%c2_84, %c0_85, %c0_86] : memref<4x1x256xf32, #tpu.memory_space<vmem>>, vector<1x1x256xf32>
    %104 = vector.shape_cast %103 : vector<1x1x256xf32> to vector<1x256xf32>
    %105 = vector.broadcast %104 : vector<1x256xf32> to vector<2x256xf32>
    %106 = arith.addf %102, %105 : vector<2x256xf32>
    %107 = vector.extract_strided_slice %106 {offsets = [0, 0], sizes = [2, 128], strides = [1, 1]} : vector<2x256xf32> to vector<2x128xf32>
    %cst_87 = arith.constant 2.000000e+00 : f32
    %108 = vector.broadcast %cst_87 : f32 to vector<2x128xf32>
    %109 = arith.divf %107, %108 : vector<2x128xf32>
    %110 = math.tanh %109 : vector<2x128xf32>
    %cst_88 = arith.constant 2.000000e+00 : f32
    %111 = vector.broadcast %cst_88 : f32 to vector<2x128xf32>
    %112 = arith.mulf %111, %110 : vector<2x128xf32>
    %113 = vector.extract_strided_slice %106 {offsets = [0, 128], sizes = [2, 128], strides = [1, 1]} : vector<2x256xf32> to vector<2x128xf32>
    %114 = math.exp %112 : vector<2x128xf32>
    %115 = arith.mulf %90, %114 : vector<2x128xf32>
    %116 = arith.addf %115, %113 : vector<2x128xf32>
    %c0_89 = arith.constant 0 : index
    %c0_90 = arith.constant 0 : index
    %117 = vector.load %arg6[%c0_89, %c0_90] : memref<2x256xf32, #tpu.memory_space<vmem>>, vector<2x128xf32>
    tpu.vector_store %arg6[%c0_89, %c0_90], %89 {strides = array<i32>} : memref<2x256xf32, #tpu.memory_space<vmem>>, vector<2x128xf32>,
    %c0_91 = arith.constant 0 : index
    %c128_92 = arith.constant 128 : index
    %118 = vector.load %arg6[%c0_91, %c128_92] : memref<2x256xf32, #tpu.memory_space<vmem>>, vector<2x128xf32>
    tpu.vector_store %arg6[%c0_91, %c128_92], %116 {strides = array<i32>} : memref<2x256xf32, #tpu.memory_space<vmem>>, vector<2x128xf32>,
    %c0_93 = arith.constant 0 : index
    %c0_94 = arith.constant 0 : index
    %119 = vector.load %arg7[%c0_93, %c0_94] : memref<2x1xf32, #tpu.memory_space<vmem>>, vector<2x1xf32>
    %cst_95 = arith.constant dense<0.000000e+00> : vector<2xf32>
    %120 = vector.multi_reduction <add>, %112, %cst_95 [1] : vector<2x128xf32> to vector<2xf32>
    %121 = vector.shape_cast %120 : vector<2xf32> to vector<2x1xf32>
    %122 = arith.addf %119, %121 : vector<2x1xf32>
    %c0_96 = arith.constant 0 : index
    %c0_97 = arith.constant 0 : index
    %123 = vector.load %arg7[%c0_96, %c0_97] : memref<2x1xf32, #tpu.memory_space<vmem>>, vector<2x1xf32>
    tpu.vector_store %arg7[%c0_96, %c0_97], %122 {strides = array<i32>} : memref<2x1xf32, #tpu.memory_space<vmem>>, vector<2x1xf32>,
    %c0_98 = arith.constant 0 : index
    %c0_99 = arith.constant 0 : index
    %124 = vector.load %arg6[%c0_98, %c0_99] : memref<2x256xf32, #tpu.memory_space<vmem>>, vector<2x256xf32>
    %c3 = arith.constant 3 : index
    %c0_100 = arith.constant 0 : index
    %c0_101 = arith.constant 0 : index
    %125 = vector.load %arg1[%c3, %c0_100, %c0_101] : memref<4x256x256xbf16, #tpu.memory_space<vmem>>, vector<1x256x256xbf16>
    %126 = vector.shape_cast %125 : vector<1x256x256xbf16> to vector<256x256xbf16>
    %127 = arith.extf %126 : vector<256x256xbf16> to vector<256x256xf32>
    %cst_102 = arith.constant dense<0.000000e+00> : vector<2x256xf32>
    %128 = tpu.matmul %124, %127, %cst_102 {dimension_numbers = #tpu.dot_dimension_numbers<[1], [0], [0], [1], [0, 0, 1, 1], [], []>} : vector<2x256xf32>, vector<256x256xf32>, vector<2x256xf32> -> vector<2x256xf32>
    %129 = vector.extract_strided_slice %128 {offsets = [0, 0], sizes = [2, 128], strides = [1, 1]} : vector<2x256xf32> to vector<2x128xf32>
    %130 = vector.extract_strided_slice %128 {offsets = [0, 128], sizes = [2, 128], strides = [1, 1]} : vector<2x256xf32> to vector<2x128xf32>
    %c3_103 = arith.constant 3 : index
    %c0_104 = arith.constant 0 : index
    %c0_105 = arith.constant 0 : index
    %131 = vector.load %arg2[%c3_103, %c0_104, %c0_105] : memref<4x128x128xf32, #tpu.memory_space<vmem>>, vector<1x128x128xf32>
    %132 = vector.shape_cast %131 : vector<1x128x128xf32> to vector<128x128xf32>
    %cst_106 = arith.constant dense<0.000000e+00> : vector<2x128xf32>
    %133 = tpu.matmul %129, %132, %cst_106 {dimension_numbers = #tpu.dot_dimension_numbers<[1], [0], [0], [1], [0, 0, 1, 1], [], []>} : vector<2x128xf32>, vector<128x128xf32>, vector<2x128xf32> -> vector<2x128xf32>
    %c3_107 = arith.constant 3 : index
    %c0_108 = arith.constant 0 : index
    %c0_109 = arith.constant 0 : index
    %134 = vector.load %arg3[%c3_107, %c0_108, %c0_109] : memref<4x1x128xf32, #tpu.memory_space<vmem>>, vector<1x1x128xf32>
    %135 = vector.shape_cast %134 : vector<1x1x128xf32> to vector<1x128xf32>
    %136 = vector.broadcast %135 : vector<1x128xf32> to vector<2x128xf32>
    %137 = arith.addf %133, %136 : vector<2x128xf32>
    %cst_110 = arith.constant 0.000000e+00 : f32
    %138 = vector.broadcast %cst_110 : f32 to vector<2x128xf32>
    %139 = arith.maximumf %137, %138 : vector<2x128xf32>
    %c3_111 = arith.constant 3 : index
    %c0_112 = arith.constant 0 : index
    %c0_113 = arith.constant 0 : index
    %140 = vector.load %arg4[%c3_111, %c0_112, %c0_113] : memref<4x128x256xf32, #tpu.memory_space<vmem>>, vector<1x128x256xf32>
    %141 = vector.shape_cast %140 : vector<1x128x256xf32> to vector<128x256xf32>
    %cst_114 = arith.constant dense<0.000000e+00> : vector<2x256xf32>
    %142 = tpu.matmul %139, %141, %cst_114 {dimension_numbers = #tpu.dot_dimension_numbers<[1], [0], [0], [1], [0, 0, 1, 1], [], []>} : vector<2x128xf32>, vector<128x256xf32>, vector<2x256xf32> -> vector<2x256xf32>
    %c3_115 = arith.constant 3 : index
    %c0_116 = arith.constant 0 : index
    %c0_117 = arith.constant 0 : index
    %143 = vector.load %arg5[%c3_115, %c0_116, %c0_117] : memref<4x1x256xf32, #tpu.memory_space<vmem>>, vector<1x1x256xf32>
    %144 = vector.shape_cast %143 : vector<1x1x256xf32> to vector<1x256xf32>
    %145 = vector.broadcast %144 : vector<1x256xf32> to vector<2x256xf32>
    %146 = arith.addf %142, %145 : vector<2x256xf32>
    %147 = vector.extract_strided_slice %146 {offsets = [0, 0], sizes = [2, 128], strides = [1, 1]} : vector<2x256xf32> to vector<2x128xf32>
    %cst_118 = arith.constant 2.000000e+00 : f32
    %148 = vector.broadcast %cst_118 : f32 to vector<2x128xf32>
    %149 = arith.divf %147, %148 : vector<2x128xf32>
    %150 = math.tanh %149 : vector<2x128xf32>
    %cst_119 = arith.constant 2.000000e+00 : f32
    %151 = vector.broadcast %cst_119 : f32 to vector<2x128xf32>
    %152 = arith.mulf %151, %150 : vector<2x128xf32>
    %153 = vector.extract_strided_slice %146 {offsets = [0, 128], sizes = [2, 128], strides = [1, 1]} : vector<2x256xf32> to vector<2x128xf32>
    %154 = math.exp %152 : vector<2x128xf32>
    %155 = arith.mulf %130, %154 : vector<2x128xf32>
    %156 = arith.addf %155, %153 : vector<2x128xf32>
    %c0_120 = arith.constant 0 : index
    %c0_121 = arith.constant 0 : index
    %157 = vector.load %arg6[%c0_120, %c0_121] : memref<2x256xf32, #tpu.memory_space<vmem>>, vector<2x128xf32>
    tpu.vector_store %arg6[%c0_120, %c0_121], %129 {strides = array<i32>} : memref<2x256xf32, #tpu.memory_space<vmem>>, vector<2x128xf32>,
    %c0_122 = arith.constant 0 : index
    %c128_123 = arith.constant 128 : index
    %158 = vector.load %arg6[%c0_122, %c128_123] : memref<2x256xf32, #tpu.memory_space<vmem>>, vector<2x128xf32>
    tpu.vector_store %arg6[%c0_122, %c128_123], %156 {strides = array<i32>} : memref<2x256xf32, #tpu.memory_space<vmem>>, vector<2x128xf32>,
    %c0_124 = arith.constant 0 : index
    %c0_125 = arith.constant 0 : index
    %159 = vector.load %arg7[%c0_124, %c0_125] : memref<2x1xf32, #tpu.memory_space<vmem>>, vector<2x1xf32>
    %cst_126 = arith.constant dense<0.000000e+00> : vector<2xf32>
    %160 = vector.multi_reduction <add>, %152, %cst_126 [1] : vector<2x128xf32> to vector<2xf32>
    %161 = vector.shape_cast %160 : vector<2xf32> to vector<2x1xf32>
    %162 = arith.addf %159, %161 : vector<2x1xf32>
    %c0_127 = arith.constant 0 : index
    %c0_128 = arith.constant 0 : index
    %163 = vector.load %arg7[%c0_127, %c0_128] : memref<2x1xf32, #tpu.memory_space<vmem>>, vector<2x1xf32>
    tpu.vector_store %arg7[%c0_127, %c0_128], %162 {strides = array<i32>} : memref<2x1xf32, #tpu.memory_space<vmem>>, vector<2x1xf32>,
    return
  }
}

</mosaic_0001>

<llo_original>
// kernel: my_model_forward.1
$region0: #{my_model_forward.1}
  #allocation0 [shape = 'u32[]', space=smem, size = 0x4, offset = 0x4, fixed_abs, tag = 'smem constant byte address 0x4 - core index']
  #allocation1 [shape = 'u32[144,128]{1,0:T(1,128)}', space=vmem, size = 0x12000, scoped, tag = 'internal scratch']
  %s0 = inlined_call_operand.vmem [shape: f32[2,256], index: 0, kind: input, shape index: {}]
  %s1 = inlined_call_operand.hbm [shape: bf16[4,256,256], index: 1, kind: input, shape index: {}]
  %s2 = inlined_call_operand.hbm [shape: f32[4,128,128], index: 2, kind: input, shape index: {}]
  %s3 = inlined_call_operand.vmem [shape: f32[4,1,128], index: 3, kind: input, shape index: {}]
  %s4 = inlined_call_operand.hbm [shape: f32[4,128,256], index: 4, kind: input, shape index: {}]
  %s5 = inlined_call_operand.vmem [shape: f32[4,1,256], index: 5, kind: input, shape index: {}]
  %s6 = inlined_call_operand.hbm [shape: f32[2,256], index: 6, kind: output, shape index: {0}]
  %s7 = inlined_call_operand.vmem [shape: f32[2,1], index: 7, kind: output, shape index: {1}]
  %8 = xla_tuple %s6, %s7
  %s9 = sld [smem:[#allocation0]]
  $region54: #{my_model_forward.1} parent=0
    _
  %s11 = ssub.s32 1, %s9
  %s12 = scalar_select 0, %s11, %s9
  $region1: #{my_model_forward.1} parent=0
    #allocation2 [shape = 'u8[524288]{0}', space=vmem, size = 0x80000, scoped, tag = 'input window, operand 1, single buffered']
    #allocation3 [shape = 's32[1]{0}', space=sflag, size = 0x4, scoped, tag = 'scoped memory for my_model_forward.1']
    #allocation4 [shape = 's32[1]{0}', space=sflag, size = 0x4, scoped, tag = 'scoped memory for my_model_forward.1']
    #allocation5 [shape = 'u8[262144]{0}', space=vmem, size = 0x40000, scoped, tag = 'input window, operand 2, single buffered']
    #allocation6 [shape = 's32[1]{0}', space=sflag, size = 0x4, scoped, tag = 'scoped memory for my_model_forward.1']
    #allocation7 [shape = 'u8[524288]{0}', space=vmem, size = 0x80000, scoped, tag = 'input window, operand 4, single buffered']
    #allocation8 [shape = 'u8[2048]{0}', space=vmem, size = 0x800, scoped, tag = 'output window, operand 0, single buffered']
    %13 = vsyncpa [#allocation3], 0
    %14 = vsyncpa [#allocation6], 0
    %15 = vsyncpa [#allocation4], 0
    // Predicated region
    $region2: #{my_model_forward.1} parent=1 // pred_check
      _
    $region3: #{my_model_forward.1} parent=1 // pred_check_branch
      %17 = sbr.rel (0) target = $region5
    $region4: #{my_model_forward.1} parent=1 // pred_region
      _
    $region5: #{my_model_forward.1} parent=1 // pred_fallthru
      _
    // Predicated region
    $region6: #{my_model_forward.1} parent=1 // pred_check
      _
    $region7: #{my_model_forward.1} parent=1 // pred_check_branch
      %19 = sbr.rel (0) target = $region9
    $region8: #{my_model_forward.1} parent=1 // pred_region
      %s21 = ssub.s32 16384, 16384
      %22 = vsyncadd [#allocation3], %s21
      %s23 = sshll.u32 [#allocation2], 4
      %s24 = int_to_ptr.vmem [resolvable:$true] %s23
      %29 = dma.hbm_to_vmem [thread:$0]  %s1, 16384, %s24, [#allocation3], 128, 128, 8
    $region9: #{my_model_forward.1} parent=1 // pred_fallthru
      _
    // Predicated region
    $region10: #{my_model_forward.1} parent=1 // pred_check
      _
    $region11: #{my_model_forward.1} parent=1 // pred_check_branch
      %31 = sbr.rel (0) target = $region13
    $region12: #{my_model_forward.1} parent=1 // pred_region
      %s33 = ssub.s32 8192, 8192
      %34 = vsyncadd [#allocation6], %s33
      %s35 = sshll.u32 [#allocation5], 4
      %s36 = int_to_ptr.vmem [resolvable:$true] %s35
      %41 = dma.hbm_to_vmem [thread:$0]  %s2, 8192, %s36, [#allocation6], 128, 128, 8
    $region13: #{my_model_forward.1} parent=1 // pred_fallthru
      _
    // Predicated region
    $region14: #{my_model_forward.1} parent=1 // pred_check
      _
    $region15: #{my_model_forward.1} parent=1 // pred_check_branch
      %43 = sbr.rel (0) target = $region17
    $region16: #{my_model_forward.1} parent=1 // pred_region
      _
    $region17: #{my_model_forward.1} parent=1 // pred_fallthru
      _
    // Predicated region
    $region18: #{my_model_forward.1} parent=1 // pred_check
      _
    $region19: #{my_model_forward.1} parent=1 // pred_check_branch
      %45 = sbr.rel (0) target = $region21
    $region20: #{my_model_forward.1} parent=1 // pred_region
      %s47 = ssub.s32 16384, 16384
      %48 = vsyncadd [#allocation6], %s47
      %s49 = sshll.u32 [#allocation7], 4
      %s50 = int_to_ptr.vmem [resolvable:$true] %s49
      %55 = dma.hbm_to_vmem [thread:$0]  %s4, 16384, %s50, [#allocation6], 256, 256, 16
    $region21: #{my_model_forward.1} parent=1 // pred_fallthru
      _
    // Predicated region
    $region22: #{my_model_forward.1} parent=1 // pred_check
      _
    $region23: #{my_model_forward.1} parent=1 // pred_check_branch
      %57 = sbr.rel (0) target = $region25
    $region24: #{my_model_forward.1} parent=1 // pred_region
      _
    $region25: #{my_model_forward.1} parent=1 // pred_fallthru
      _
    // Predicated region
    $region26: #{my_model_forward.1} parent=1 // pred_check
      _
    $region27: #{my_model_forward.1} parent=1 // pred_check_branch
      %59 = sbr.rel (0) target = $region29
    $region28: #{my_model_forward.1} parent=1 // pred_region
      %60 = dma.done [#allocation3], 16384
    $region29: #{my_model_forward.1} parent=1 // pred_fallthru
      _
    // Predicated region
    $region30: #{my_model_forward.1} parent=1 // pred_check
      _
    $region31: #{my_model_forward.1} parent=1 // pred_check_branch
      %62 = sbr.rel (0) target = $region33
    $region32: #{my_model_forward.1} parent=1 // pred_region
      %63 = dma.done [#allocation6], 8192
    $region33: #{my_model_forward.1} parent=1 // pred_fallthru
      _
    // Predicated region
    $region34: #{my_model_forward.1} parent=1 // pred_check
      _
    $region35: #{my_model_forward.1} parent=1 // pred_check_branch
      %65 = sbr.rel (0) target = $region37
    $region36: #{my_model_forward.1} parent=1 // pred_region
      %66 = dma.done [#allocation6], 16384
    $region37: #{my_model_forward.1} parent=1 // pred_fallthru
      _
    %v67 = vld [vmem:[%s0] sm:$0xf]
    %68 = vst [vmem:[#allocation8] sm:$0xf] %v67
    %vm69 = vcmask 1024
    %70 = vst.msk [vmem:[%s7] sm:$0x3] %vm69, 0.0
    %v71 = vld [vmem:[#allocation8] sm:$0xf]
    %v72 = vld [vmem:[#allocation2] sm:$0xff]
    %v73 = vld [vmem:[#allocation2 + $0x8] sm:$0xff]
    %v74 = vld [vmem:[#allocation2 + $0x10] sm:$0xff]
    %v75 = vld [vmem:[#allocation2 + $0x18] sm:$0xff]
    %v76 = vld [vmem:[#allocation2 + $0x20] sm:$0xff]
    %v77 = vld [vmem:[#allocation2 + $0x28] sm:$0xff]
    %v78 = vld [vmem:[#allocation2 + $0x30] sm:$0xff]
    %v79 = vld [vmem:[#allocation2 + $0x38] sm:$0xff]
    %v80 = vld [vmem:[#allocation2 + $0x40] sm:$0xff]
    %v81 = vld [vmem:[#allocation2 + $0x48] sm:$0xff]
    %v82 = vld [vmem:[#allocation2 + $0x50] sm:$0xff]
    %v83 = vld [vmem:[#allocation2 + $0x58] sm:$0xff]
    %v84 = vld [vmem:[#allocation2 + $0x60] sm:$0xff]
    %v85 = vld [vmem:[#allocation2 + $0x68] sm:$0xff]
    %v86 = vld [vmem:[#allocation2 + $0x70] sm:$0xff]
    %v87 = vld [vmem:[#allocation2 + $0x78] sm:$0xff]
    %v88 = vld [vmem:[#allocation2 + $0x80] sm:$0xff]
    %v89 = vld [vmem:[#allocation2 + $0x88] sm:$0xff]
    %v90 = vld [vmem:[#allocation2 + $0x90] sm:$0xff]
    %v91 = vld [vmem:[#allocation2 + $0x98] sm:$0xff]
    %v92 = vld [vmem:[#allocation2 + $0xa0] sm:$0xff]
    %v93 = vld [vmem:[#allocation2 + $0xa8] sm:$0xff]
    %v94 = vld [vmem:[#allocation2 + $0xb0] sm:$0xff]
    %v95 = vld [vmem:[#allocation2 + $0xb8] sm:$0xff]
    %v96 = vld [vmem:[#allocation2 + $0xc0] sm:$0xff]
    %v97 = vld [vmem:[#allocation2 + $0xc8] sm:$0xff]
    %v98 = vld [vmem:[#allocation2 + $0xd0] sm:$0xff]
    %v99 = vld [vmem:[#allocation2 + $0xd8] sm:$0xff]
    %v100 = vld [vmem:[#allocation2 + $0xe0] sm:$0xff]
    %v101 = vld [vmem:[#allocation2 + $0xe8] sm:$0xff]
    %v102 = vld [vmem:[#allocation2 + $0xf0] sm:$0xff]
    %v103 = vld [vmem:[#allocation2 + $0xf8] sm:$0xff]
    %v104 = vunpack.c.l.bf16 %v72
    %v105 = vunpack.c.h.bf16 %v72
    %v106 = vunpack.c.l.bf16 %v73
    %v107 = vunpack.c.h.bf16 %v73
    %v108 = vunpack.c.l.bf16 %v74
    %v109 = vunpack.c.h.bf16 %v74
    %v110 = vunpack.c.l.bf16 %v75
    %v111 = vunpack.c.h.bf16 %v75
    %v112 = vunpack.c.l.bf16 %v76
    %v113 = vunpack.c.h.bf16 %v76
    %v114 = vunpack.c.l.bf16 %v77
    %v115 = vunpack.c.h.bf16 %v77
    %v116 = vunpack.c.l.bf16 %v78
    %v117 = vunpack.c.h.bf16 %v78
    %v118 = vunpack.c.l.bf16 %v79
    %v119 = vunpack.c.h.bf16 %v79
    %v120 = vunpack.c.l.bf16 %v80
    %v121 = vunpack.c.h.bf16 %v80
    %v122 = vunpack.c.l.bf16 %v81
    %v123 = vunpack.c.h.bf16 %v81
    %v124 = vunpack.c.l.bf16 %v82
    %v125 = vunpack.c.h.bf16 %v82
    %v126 = vunpack.c.l.bf16 %v83
    %v127 = vunpack.c.h.bf16 %v83
    %v128 = vunpack.c.l.bf16 %v84
    %v129 = vunpack.c.h.bf16 %v84
    %v130 = vunpack.c.l.bf16 %v85
    %v131 = vunpack.c.h.bf16 %v85
    %v132 = vunpack.c.l.bf16 %v86
    %v133 = vunpack.c.h.bf16 %v86
    %v134 = vunpack.c.l.bf16 %v87
    %v135 = vunpack.c.h.bf16 %v87
    %v136 = vunpack.c.l.bf16 %v88
    %v137 = vunpack.c.h.bf16 %v88
    %v138 = vunpack.c.l.bf16 %v89
    %v139 = vunpack.c.h.bf16 %v89
    %v140 = vunpack.c.l.bf16 %v90
    %v141 = vunpack.c.h.bf16 %v90
    %v142 = vunpack.c.l.bf16 %v91
    %v143 = vunpack.c.h.bf16 %v91
    %v144 = vunpack.c.l.bf16 %v92
    %v145 = vunpack.c.h.bf16 %v92
    %v146 = vunpack.c.l.bf16 %v93
    %v147 = vunpack.c.h.bf16 %v93
    %v148 = vunpack.c.l.bf16 %v94
    %v149 = vunpack.c.h.bf16 %v94
    %v150 = vunpack.c.l.bf16 %v95
    %v151 = vunpack.c.h.bf16 %v95
    %v152 = vunpack.c.l.bf16 %v96
    %v153 = vunpack.c.h.bf16 %v96
    %v154 = vunpack.c.l.bf16 %v97
    %v155 = vunpack.c.h.bf16 %v97
    %v156 = vunpack.c.l.bf16 %v98
    %v157 = vunpack.c.h.bf16 %v98
    %v158 = vunpack.c.l.bf16 %v99
    %v159 = vunpack.c.h.bf16 %v99
    %v160 = vunpack.c.l.bf16 %v100
    %v161 = vunpack.c.h.bf16 %v100
    %v162 = vunpack.c.l.bf16 %v101
    %v163 = vunpack.c.h.bf16 %v101
    %v164 = vunpack.c.l.bf16 %v102
    %v165 = vunpack.c.h.bf16 %v102
    %v166 = vunpack.c.l.bf16 %v103
    %v167 = vunpack.c.h.bf16 %v103
    %v170 = vunpack.c.l.s4 1983009808
    %v171 = vunpack.c.0.s8 %v170
    %v172 = vlaneseq
    %v173 = vshrl.u32 %v172, 7
    %v174 = vsub.s32 %v171, %v173
    %v175 = vrot.slane %v71, %v174
    %v176 = vcombine.high %v175, %v175
    %179 = vmatprep.subr.mxu0 %v105
    %180 = vmatpush1.msra.mxu0 %v104
    %181 = vmatprep.subr.mxu0 %v107
    %182 = vmatpush1.msra.mxu0 %v106
    %183 = vmatprep.subr.mxu0 %v109
    %184 = vmatpush1.msra.mxu0 %v108
    %185 = vmatprep.subr.mxu0 %v111
    %186 = vmatpush1.msra.mxu0 %v110
    %187 = vmatprep.subr.mxu0 %v113
    %188 = vmatpush1.msra.mxu0 %v112
    %189 = vmatprep.subr.mxu0 %v115
    %190 = vmatpush1.msra.mxu0 %v114
    %191 = vmatprep.subr.mxu0 %v117
    %192 = vmatpush1.msra.mxu0 %v116
    %193 = vmatprep.subr.mxu0 %v119
    %194 = vmatpush1.msra.mxu0 %v118
    %195 = vmatprep.subr.mxu0 %v121
    %196 = vmatpush1.msra.mxu0 %v120
    %197 = vmatprep.subr.mxu0 %v123
    %198 = vmatpush1.msra.mxu0 %v122
    %199 = vmatprep.subr.mxu0 %v125
    %200 = vmatpush1.msra.mxu0 %v124
    %201 = vmatprep.subr.mxu0 %v127
    %202 = vmatpush1.msra.mxu0 %v126
    %203 = vmatprep.subr.mxu0 %v129
    %204 = vmatpush1.msra.mxu0 %v128
    %205 = vmatprep.subr.mxu0 %v131
    %206 = vmatpush1.msra.mxu0 %v130
    %207 = vmatprep.subr.mxu0 %v133
    %208 = vmatpush1.msra.mxu0 %v132
    %209 = vmatprep.subr.mxu0 %v135
    %210 = vmatpush1.msra.mxu0 %v134
    %211 = vmatprep.subr.mxu0 %v137
    %212 = vmatpush1.msra.mxu0 %v136
    %213 = vmatprep.subr.mxu0 %v139
    %214 = vmatpush1.msra.mxu0 %v138
    %215 = vmatprep.subr.mxu0 %v141
    %216 = vmatpush1.msra.mxu0 %v140
    %217 = vmatprep.subr.mxu0 %v143
    %218 = vmatpush1.msra.mxu0 %v142
    %219 = vmatprep.subr.mxu0 %v145
    %220 = vmatpush1.msra.mxu0 %v144
    %221 = vmatprep.subr.mxu0 %v147
    %222 = vmatpush1.msra.mxu0 %v146
    %223 = vmatprep.subr.mxu0 %v149
    %224 = vmatpush1.msra.mxu0 %v148
    %225 = vmatprep.subr.mxu0 %v151
    %226 = vmatpush1.msra.mxu0 %v150
    %227 = vmatprep.subr.mxu0 %v153
    %228 = vmatpush1.msra.mxu0 %v152
    %229 = vmatprep.subr.mxu0 %v155
    %230 = vmatpush1.msra.mxu0 %v154
    %231 = vmatprep.subr.mxu0 %v157
    %232 = vmatpush1.msra.mxu0 %v156
    %233 = vmatprep.subr.mxu0 %v159
    %234 = vmatpush1.msra.mxu0 %v158
    %235 = vmatprep.subr.mxu0 %v161
    %236 = vmatpush1.msra.mxu0 %v160
    %237 = vmatprep.subr.mxu0 %v163
    %238 = vmatpush1.msra.mxu0 %v162
    %239 = vmatprep.subr.mxu0 %v165
    %240 = vmatpush1.msra.mxu0 %v164
    %241 = vmatprep.subr.mxu0 %v167
    %242 = vmatpush1.msra.mxu0 %v166
    %243 = vmatprep.mubr.f32.mxu0 %v176
    %244 = vmatmul.mubr.f32.gmra.mrb[0].mxu0 %v175
    %v245 = vpop.f32.mrb[0].mxu0
    %v246 = vadd.f32 0.0, %v245
    %v247 = vpop.f32.mrb[0].mxu0
    %v248 = vadd.f32 0.0, %v247
    %249 = vdwg.mxu0
    %v250 = vld [vmem:[#allocation5] sm:$0xff]
    %v251 = vld [vmem:[#allocation5 + $0x8] sm:$0xff]
    %v252 = vld [vmem:[#allocation5 + $0x10] sm:$0xff]
    %v253 = vld [vmem:[#allocation5 + $0x18] sm:$0xff]
    %v254 = vld [vmem:[#allocation5 + $0x20] sm:$0xff]
    %v255 = vld [vmem:[#allocation5 + $0x28] sm:$0xff]
    %v256 = vld [vmem:[#allocation5 + $0x30] sm:$0xff]
    %v257 = vld [vmem:[#allocation5 + $0x38] sm:$0xff]
    %v258 = vld [vmem:[#allocation5 + $0x40] sm:$0xff]
    %v259 = vld [vmem:[#allocation5 + $0x48] sm:$0xff]
    %v260 = vld [vmem:[#allocation5 + $0x50] sm:$0xff]
    %v261 = vld [vmem:[#allocation5 + $0x58] sm:$0xff]
    %v262 = vld [vmem:[#allocation5 + $0x60] sm:$0xff]
    %v263 = vld [vmem:[#allocation5 + $0x68] sm:$0xff]
    %v264 = vld [vmem:[#allocation5 + $0x70] sm:$0xff]
    %v265 = vld [vmem:[#allocation5 + $0x78] sm:$0xff]
    %v266 = vld [vmem:[%s3] sm:$0x1]
    %v268 = vlaneseq
    %v269 = vshrl.u32 %v268, 7
    %v270 = vsub.s32 0, %v269
    %v271 = vrot.slane %v266, %v270
    %273 = vmatprep.subr.mxu0 0.0
    %274 = vmatpush1.msra.mxu0 %v250
    %275 = vmatprep.subr.mxu0 0.0
    %276 = vmatpush1.msra.mxu0 %v251
    %277 = vmatprep.subr.mxu0 0.0
    %278 = vmatpush1.msra.mxu0 %v252
    %279 = vmatprep.subr.mxu0 0.0
    %280 = vmatpush1.msra.mxu0 %v253
    %281 = vmatprep.subr.mxu0 0.0
    %282 = vmatpush1.msra.mxu0 %v254
    %283 = vmatprep.subr.mxu0 0.0
    %284 = vmatpush1.msra.mxu0 %v255
    %285 = vmatprep.subr.mxu0 0.0
    %286 = vmatpush1.msra.mxu0 %v256
    %287 = vmatprep.subr.mxu0 0.0
    %288 = vmatpush1.msra.mxu0 %v257
    %289 = vmatprep.subr.mxu0 0.0
    %290 = vmatpush1.msra.mxu0 %v258
    %291 = vmatprep.subr.mxu0 0.0
    %292 = vmatpush1.msra.mxu0 %v259
    %293 = vmatprep.subr.mxu0 0.0
    %294 = vmatpush1.msra.mxu0 %v260
    %295 = vmatprep.subr.mxu0 0.0
    %296 = vmatpush1.msra.mxu0 %v261
    %297 = vmatprep.subr.mxu0 0.0
    %298 = vmatpush1.msra.mxu0 %v262
    %299 = vmatprep.subr.mxu0 0.0
    %300 = vmatpush1.msra.mxu0 %v263
    %301 = vmatprep.subr.mxu0 0.0
    %302 = vmatpush1.msra.mxu0 %v264
    %303 = vmatprep.subr.mxu0 0.0
    %304 = vmatpush1.msra.mxu0 %v265
    %305 = vmatprep.subr.mxu0 0.0
    %306 = vmatpush1.msra.mxu0 0.0
    %307 = vmatprep.subr.mxu0 0.0
    %308 = vmatpush1.msra.mxu0 0.0
    %309 = vmatprep.subr.mxu0 0.0
    %310 = vmatpush1.msra.mxu0 0.0
    %311 = vmatprep.subr.mxu0 0.0
    %312 = vmatpush1.msra.mxu0 0.0
    %313 = vmatprep.subr.mxu0 0.0
    %314 = vmatpush1.msra.mxu0 0.0
    %315 = vmatprep.subr.mxu0 0.0
    %316 = vmatpush1.msra.mxu0 0.0
    %317 = vmatprep.subr.mxu0 0.0
    %318 = vmatpush1.msra.mxu0 0.0
    %319 = vmatprep.subr.mxu0 0.0
    %320 = vmatpush1.msra.mxu0 0.0
    %321 = vmatprep.subr.mxu0 0.0
    %322 = vmatpush1.msra.mxu0 0.0
    %323 = vmatprep.subr.mxu0 0.0
    %324 = vmatpush1.msra.mxu0 0.0
    %325 = vmatprep.subr.mxu0 0.0
    %326 = vmatpush1.msra.mxu0 0.0
    %327 = vmatprep.subr.mxu0 0.0
    %328 = vmatpush1.msra.mxu0 0.0
    %329 = vmatprep.subr.mxu0 0.0
    %330 = vmatpush1.msra.mxu0 0.0
    %331 = vmatprep.subr.mxu0 0.0
    %332 = vmatpush1.msra.mxu0 0.0
    %333 = vmatprep.subr.mxu0 0.0
    %334 = vmatpush1.msra.mxu0 0.0
    %335 = vmatprep.subr.mxu0 0.0
    %336 = vmatpush1.msra.mxu0 0.0
    %337 = vmatprep.mubr.f32.mxu0 0.0
    %338 = vmatmul.mubr.f32.gmra.mrb[0].mxu0 %v246
    %v339 = vpop.f32.mrb[0].mxu0
    %v340 = vadd.f32 %v271, %v339
    %v341 = vpop.f32.mrb[0].mxu0
    %342 = vdwg.mxu0
    %v343 = vmax.f32 %v340, 0.0
    %v344 = vld [vmem:[#allocation7] sm:$0xff]
    %v345 = vld [vmem:[#allocation7 + $0x8] sm:$0xff]
    %v346 = vld [vmem:[#allocation7 + $0x10] sm:$0xff]
    %v347 = vld [vmem:[#allocation7 + $0x18] sm:$0xff]
    %v348 = vld [vmem:[#allocation7 + $0x20] sm:$0xff]
    %v349 = vld [vmem:[#allocation7 + $0x28] sm:$0xff]
    %v350 = vld [vmem:[#allocation7 + $0x30] sm:$0xff]
    %v351 = vld [vmem:[#allocation7 + $0x38] sm:$0xff]
    %v352 = vld [vmem:[#allocation7 + $0x40] sm:$0xff]
    %v353 = vld [vmem:[#allocation7 + $0x48] sm:$0xff]
    %v354 = vld [vmem:[#allocation7 + $0x50] sm:$0xff]
    %v355 = vld [vmem:[#allocation7 + $0x58] sm:$0xff]
    %v356 = vld [vmem:[#allocation7 + $0x60] sm:$0xff]
    %v357 = vld [vmem:[#allocation7 + $0x68] sm:$0xff]
    %v358 = vld [vmem:[#allocation7 + $0x70] sm:$0xff]
    %v359 = vld [vmem:[#allocation7 + $0x78] sm:$0xff]
    %v360 = vld [vmem:[#allocation7 + $0x80] sm:$0xff]
    %v361 = vld [vmem:[#allocation7 + $0x88] sm:$0xff]
    %v362 = vld [vmem:[#allocation7 + $0x90] sm:$0xff]
    %v363 = vld [vmem:[#allocation7 + $0x98] sm:$0xff]
    %v364 = vld [vmem:[#allocation7 + $0xa0] sm:$0xff]
    %v365 = vld [vmem:[#allocation7 + $0xa8] sm:$0xff]
    %v366 = vld [vmem:[#allocation7 + $0xb0] sm:$0xff]
    %v367 = vld [vmem:[#allocation7 + $0xb8] sm:$0xff]
    %v368 = vld [vmem:[#allocation7 + $0xc0] sm:$0xff]
    %v369 = vld [vmem:[#allocation7 + $0xc8] sm:$0xff]
    %v370 = vld [vmem:[#allocation7 + $0xd0] sm:$0xff]
    %v371 = vld [vmem:[#allocation7 + $0xd8] sm:$0xff]
    %v372 = vld [vmem:[#allocation7 + $0xe0] sm:$0xff]
    %v373 = vld [vmem:[#allocation7 + $0xe8] sm:$0xff]
    %v374 = vld [vmem:[#allocation7 + $0xf0] sm:$0xff]
    %v375 = vld [vmem:[#allocation7 + $0xf8] sm:$0xff]
    %v376 = vld [vmem:[%s5] sm:$0x3]
    %v378 = vlaneseq
    %v379 = vshrl.u32 %v378, 7
    %v380 = vsub.s32 0, %v379
    %v381 = vrot.slane %v376, %v380
    %v382 = vlaneseq
    %v383 = vshrl.u32 %v382, 7
    %v384 = vsub.s32 1, %v383
    %v385 = vrot.slane %v376, %v384
    %388 = vmatprep.subr.mxu0 %v345
    %389 = vmatpush1.msra.mxu0 %v344
    %390 = vmatprep.subr.mxu0 %v347
    %391 = vmatpush1.msra.mxu0 %v346
    %392 = vmatprep.subr.mxu0 %v349
    %393 = vmatpush1.msra.mxu0 %v348
    %394 = vmatprep.subr.mxu0 %v351
    %395 = vmatpush1.msra.mxu0 %v350
    %396 = vmatprep.subr.mxu0 %v353
    %397 = vmatpush1.msra.mxu0 %v352
    %398 = vmatprep.subr.mxu0 %v355
    %399 = vmatpush1.msra.mxu0 %v354
    %400 = vmatprep.subr.mxu0 %v357
    %401 = vmatpush1.msra.mxu0 %v356
    %402 = vmatprep.subr.mxu0 %v359
    %403 = vmatpush1.msra.mxu0 %v358
    %404 = vmatprep.subr.mxu0 %v361
    %405 = vmatpush1.msra.mxu0 %v360
    %406 = vmatprep.subr.mxu0 %v363
    %407 = vmatpush1.msra.mxu0 %v362
    %408 = vmatprep.subr.mxu0 %v365
    %409 = vmatpush1.msra.mxu0 %v364
    %410 = vmatprep.subr.mxu0 %v367
    %411 = vmatpush1.msra.mxu0 %v366
    %412 = vmatprep.subr.mxu0 %v369
    %413 = vmatpush1.msra.mxu0 %v368
    %414 = vmatprep.subr.mxu0 %v371
    %415 = vmatpush1.msra.mxu0 %v370
    %416 = vmatprep.subr.mxu0 %v373
    %417 = vmatpush1.msra.mxu0 %v372
    %418 = vmatprep.subr.mxu0 %v375
    %419 = vmatpush1.msra.mxu0 %v374
    %420 = vmatprep.subr.mxu0 0.0
    %421 = vmatpush1.msra.mxu0 0.0
    %422 = vmatprep.subr.mxu0 0.0
    %423 = vmatpush1.msra.mxu0 0.0
    %424 = vmatprep.subr.mxu0 0.0
    %425 = vmatpush1.msra.mxu0 0.0
    %426 = vmatprep.subr.mxu0 0.0
    %427 = vmatpush1.msra.mxu0 0.0
    %428 = vmatprep.subr.mxu0 0.0
    %429 = vmatpush1.msra.mxu0 0.0
    %430 = vmatprep.subr.mxu0 0.0
    %431 = vmatpush1.msra.mxu0 0.0
    %432 = vmatprep.subr.mxu0 0.0
    %433 = vmatpush1.msra.mxu0 0.0
    %434 = vmatprep.subr.mxu0 0.0
    %435 = vmatpush1.msra.mxu0 0.0
    %436 = vmatprep.subr.mxu0 0.0
    %437 = vmatpush1.msra.mxu0 0.0
    %438 = vmatprep.subr.mxu0 0.0
    %439 = vmatpush1.msra.mxu0 0.0
    %440 = vmatprep.subr.mxu0 0.0
    %441 = vmatpush1.msra.mxu0 0.0
    %442 = vmatprep.subr.mxu0 0.0
    %443 = vmatpush1.msra.mxu0 0.0
    %444 = vmatprep.subr.mxu0 0.0
    %445 = vmatpush1.msra.mxu0 0.0
    %446 = vmatprep.subr.mxu0 0.0
    %447 = vmatpush1.msra.mxu0 0.0
    %448 = vmatprep.subr.mxu0 0.0
    %449 = vmatpush1.msra.mxu0 0.0
    %450 = vmatprep.subr.mxu0 0.0
    %451 = vmatpush1.msra.mxu0 0.0
    %452 = vmatprep.mubr.f32.mxu0 0.0
    %453 = vmatmul.mubr.f32.gmra.mrb[0].mxu0 %v343
    %v454 = vpop.f32.mrb[0].mxu0
    %v455 = vadd.f32 %v381, %v454
    %v456 = vpop.f32.mrb[0].mxu0
    %v457 = vadd.f32 %v385, %v456
    %458 = vdwg.mxu0
    %v459 = vrcp.pop 2.0
    %v460 = vmul.f32 %v455, %v459
    %v461 = vtanh.pop %v460
    %v462 = vmul.f32 %v461, 2.0
    %v463 = vmul.f32 %v462, 1.442695
    %v464 = vpow.pop %v463
    %v465 = vmul.f32 %v248, %v464
    %v466 = vadd.f32 %v465, %v457
    %467 = vst [vmem:[#allocation8] sm:$0x3] %v246
    %468 = vst [vmem:[#allocation8 + $0x2] sm:$0x3] %v466
    %v469 = vld [vmem:[%s7] sm:$0x3]
    %vm470 = vcmask 1041408
    %v471 = vsel %vm470, %v462, 0.0
    %472 = vadd.xlane.f32.xlu0 %v471
    %v473 = vpop.xlane.xlu0 %472
    %v474 = vadd.f32 %v469, %v473
    %475 = vst.msk [vmem:[%s7] sm:$0x3] %vm69, %v474
    %v476 = vld [vmem:[#allocation8] sm:$0xf]
    %s477 = scalar_lea.vmem [#allocation2], 256
    %v478 = vld [vmem:[%s477] sm:$0xff]
    %v479 = vld [vmem:[%s477 + $0x8] sm:$0xff]
    %v480 = vld [vmem:[%s477 + $0x10] sm:$0xff]
    %v481 = vld [vmem:[%s477 + $0x18] sm:$0xff]
    %v482 = vld [vmem:[%s477 + $0x20] sm:$0xff]
    %v483 = vld [vmem:[%s477 + $0x28] sm:$0xff]
    %v484 = vld [vmem:[%s477 + $0x30] sm:$0xff]
    %v485 = vld [vmem:[%s477 + $0x38] sm:$0xff]
    %v486 = vld [vmem:[%s477 + $0x40] sm:$0xff]
    %v487 = vld [vmem:[%s477 + $0x48] sm:$0xff]
    %v488 = vld [vmem:[%s477 + $0x50] sm:$0xff]
    %v489 = vld [vmem:[%s477 + $0x58] sm:$0xff]
    %v490 = vld [vmem:[%s477 + $0x60] sm:$0xff]
    %v491 = vld [vmem:[%s477 + $0x68] sm:$0xff]
    %v492 = vld [vmem:[%s477 + $0x70] sm:$0xff]
    %v493 = vld [vmem:[%s477 + $0x78] sm:$0xff]
    %v494 = vld [vmem:[%s477 + $0x80] sm:$0xff]
    %v495 = vld [vmem:[%s477 + $0x88] sm:$0xff]
    %v496 = vld [vmem:[%s477 + $0x90] sm:$0xff]
    %v497 = vld [vmem:[%s477 + $0x98] sm:$0xff]
    %v498 = vld [vmem:[%s477 + $0xa0] sm:$0xff]
    %v499 = vld [vmem:[%s477 + $0xa8] sm:$0xff]
    %v500 = vld [vmem:[%s477 + $0xb0] sm:$0xff]
    %v501 = vld [vmem:[%s477 + $0xb8] sm:$0xff]
    %v502 = vld [vmem:[%s477 + $0xc0] sm:$0xff]
    %v503 = vld [vmem:[%s477 + $0xc8] sm:$0xff]
    %v504 = vld [vmem:[%s477 + $0xd0] sm:$0xff]
    %v505 = vld [vmem:[%s477 + $0xd8] sm:$0xff]
    %v506 = vld [vmem:[%s477 + $0xe0] sm:$0xff]
    %v507 = vld [vmem:[%s477 + $0xe8] sm:$0xff]
    %v508 = vld [vmem:[%s477 + $0xf0] sm:$0xff]
    %v509 = vld [vmem:[%s477 + $0xf8] sm:$0xff]
    %v510 = vunpack.c.l.bf16 %v478
    %v511 = vunpack.c.h.bf16 %v478
    %v512 = vunpack.c.l.bf16 %v479
    %v513 = vunpack.c.h.bf16 %v479
    %v514 = vunpack.c.l.bf16 %v480
    %v515 = vunpack.c.h.bf16 %v480
    %v516 = vunpack.c.l.bf16 %v481
    %v517 = vunpack.c.h.bf16 %v481
    %v518 = vunpack.c.l.bf16 %v482
    %v519 = vunpack.c.h.bf16 %v482
    %v520 = vunpack.c.l.bf16 %v483
    %v521 = vunpack.c.h.bf16 %v483
    %v522 = vunpack.c.l.bf16 %v484
    %v523 = vunpack.c.h.bf16 %v484
    %v524 = vunpack.c.l.bf16 %v485
    %v525 = vunpack.c.h.bf16 %v485
    %v526 = vunpack.c.l.bf16 %v486
    %v527 = vunpack.c.h.bf16 %v486
    %v528 = vunpack.c.l.bf16 %v487
    %v529 = vunpack.c.h.bf16 %v487
    %v530 = vunpack.c.l.bf16 %v488
    %v531 = vunpack.c.h.bf16 %v488
    %v532 = vunpack.c.l.bf16 %v489
    %v533 = vunpack.c.h.bf16 %v489
    %v534 = vunpack.c.l.bf16 %v490
    %v535 = vunpack.c.h.bf16 %v490
    %v536 = vunpack.c.l.bf16 %v491
    %v537 = vunpack.c.h.bf16 %v491
    %v538 = vunpack.c.l.bf16 %v492
    %v539 = vunpack.c.h.bf16 %v492
    %v540 = vunpack.c.l.bf16 %v493
    %v541 = vunpack.c.h.bf16 %v493
    %v542 = vunpack.c.l.bf16 %v494
    %v543 = vunpack.c.h.bf16 %v494
    %v544 = vunpack.c.l.bf16 %v495
    %v545 = vunpack.c.h.bf16 %v495
    %v546 = vunpack.c.l.bf16 %v496
    %v547 = vunpack.c.h.bf16 %v496
    %v548 = vunpack.c.l.bf16 %v497
    %v549 = vunpack.c.h.bf16 %v497
    %v550 = vunpack.c.l.bf16 %v498
    %v551 = vunpack.c.h.bf16 %v498
    %v552 = vunpack.c.l.bf16 %v499
    %v553 = vunpack.c.h.bf16 %v499
    %v554 = vunpack.c.l.bf16 %v500
    %v555 = vunpack.c.h.bf16 %v500
    %v556 = vunpack.c.l.bf16 %v501
    %v557 = vunpack.c.h.bf16 %v501
    %v558 = vunpack.c.l.bf16 %v502
    %v559 = vunpack.c.h.bf16 %v502
    %v560 = vunpack.c.l.bf16 %v503
    %v561 = vunpack.c.h.bf16 %v503
    %v562 = vunpack.c.l.bf16 %v504
    %v563 = vunpack.c.h.bf16 %v504
    %v564 = vunpack.c.l.bf16 %v505
    %v565 = vunpack.c.h.bf16 %v505
    %v566 = vunpack.c.l.bf16 %v506
    %v567 = vunpack.c.h.bf16 %v506
    %v568 = vunpack.c.l.bf16 %v507
    %v569 = vunpack.c.h.bf16 %v507
    %v570 = vunpack.c.l.bf16 %v508
    %v571 = vunpack.c.h.bf16 %v508
    %v572 = vunpack.c.l.bf16 %v509
    %v573 = vunpack.c.h.bf16 %v509
    %v576 = vunpack.c.l.s4 1983009808
    %v577 = vunpack.c.0.s8 %v576
    %v578 = vlaneseq
    %v579 = vshrl.u32 %v578, 7
    %v580 = vsub.s32 %v577, %v579
    %v581 = vrot.slane %v476, %v580
    %v582 = vcombine.high %v581, %v581
    %585 = vmatprep.subr.mxu0 %v511
    %586 = vmatpush1.msra.mxu0 %v510
    %587 = vmatprep.subr.mxu0 %v513
    %588 = vmatpush1.msra.mxu0 %v512
    %589 = vmatprep.subr.mxu0 %v515
    %590 = vmatpush1.msra.mxu0 %v514
    %591 = vmatprep.subr.mxu0 %v517
    %592 = vmatpush1.msra.mxu0 %v516
    %593 = vmatprep.subr.mxu0 %v519
    %594 = vmatpush1.msra.mxu0 %v518
    %595 = vmatprep.subr.mxu0 %v521
    %596 = vmatpush1.msra.mxu0 %v520
    %597 = vmatprep.subr.mxu0 %v523
    %598 = vmatpush1.msra.mxu0 %v522
    %599 = vmatprep.subr.mxu0 %v525
    %600 = vmatpush1.msra.mxu0 %v524
    %601 = vmatprep.subr.mxu0 %v527
    %602 = vmatpush1.msra.mxu0 %v526
    %603 = vmatprep.subr.mxu0 %v529
    %604 = vmatpush1.msra.mxu0 %v528
    %605 = vmatprep.subr.mxu0 %v531
    %606 = vmatpush1.msra.mxu0 %v530
    %607 = vmatprep.subr.mxu0 %v533
    %608 = vmatpush1.msra.mxu0 %v532
    %609 = vmatprep.subr.mxu0 %v535
    %610 = vmatpush1.msra.mxu0 %v534
    %611 = vmatprep.subr.mxu0 %v537
    %612 = vmatpush1.msra.mxu0 %v536
    %613 = vmatprep.subr.mxu0 %v539
    %614 = vmatpush1.msra.mxu0 %v538
    %615 = vmatprep.subr.mxu0 %v541
    %616 = vmatpush1.msra.mxu0 %v540
    %617 = vmatprep.subr.mxu0 %v543
    %618 = vmatpush1.msra.mxu0 %v542
    %619 = vmatprep.subr.mxu0 %v545
    %620 = vmatpush1.msra.mxu0 %v544
    %621 = vmatprep.subr.mxu0 %v547
    %622 = vmatpush1.msra.mxu0 %v546
    %623 = vmatprep.subr.mxu0 %v549
    %624 = vmatpush1.msra.mxu0 %v548
    %625 = vmatprep.subr.mxu0 %v551
    %626 = vmatpush1.msra.mxu0 %v550
    %627 = vmatprep.subr.mxu0 %v553
    %628 = vmatpush1.msra.mxu0 %v552
    %629 = vmatprep.subr.mxu0 %v555
    %630 = vmatpush1.msra.mxu0 %v554
    %631 = vmatprep.subr.mxu0 %v557
    %632 = vmatpush1.msra.mxu0 %v556
    %633 = vmatprep.subr.mxu0 %v559
    %634 = vmatpush1.msra.mxu0 %v558
    %635 = vmatprep.subr.mxu0 %v561
    %636 = vmatpush1.msra.mxu0 %v560
    %637 = vmatprep.subr.mxu0 %v563
    %638 = vmatpush1.msra.mxu0 %v562
    %639 = vmatprep.subr.mxu0 %v565
    %640 = vmatpush1.msra.mxu0 %v564
    %641 = vmatprep.subr.mxu0 %v567
    %642 = vmatpush1.msra.mxu0 %v566
    %643 = vmatprep.subr.mxu0 %v569
    %644 = vmatpush1.msra.mxu0 %v568
    %645 = vmatprep.subr.mxu0 %v571
    %646 = vmatpush1.msra.mxu0 %v570
    %647 = vmatprep.subr.mxu0 %v573
    %648 = vmatpush1.msra.mxu0 %v572
    %649 = vmatprep.mubr.f32.mxu0 %v582
    %650 = vmatmul.mubr.f32.gmra.mrb[0].mxu0 %v581
    %v651 = vpop.f32.mrb[0].mxu0
    %v652 = vadd.f32 0.0, %v651
    %v653 = vpop.f32.mrb[0].mxu0
    %v654 = vadd.f32 0.0, %v653
    %655 = vdwg.mxu0
    %s656 = scalar_lea.vmem [#allocation5], 128
    %v657 = vld [vmem:[%s656] sm:$0xff]
    %v658 = vld [vmem:[%s656 + $0x8] sm:$0xff]
    %v659 = vld [vmem:[%s656 + $0x10] sm:$0xff]
    %v660 = vld [vmem:[%s656 + $0x18] sm:$0xff]
    %v661 = vld [vmem:[%s656 + $0x20] sm:$0xff]
    %v662 = vld [vmem:[%s656 + $0x28] sm:$0xff]
    %v663 = vld [vmem:[%s656 + $0x30] sm:$0xff]
    %v664 = vld [vmem:[%s656 + $0x38] sm:$0xff]
    %v665 = vld [vmem:[%s656 + $0x40] sm:$0xff]
    %v666 = vld [vmem:[%s656 + $0x48] sm:$0xff]
    %v667 = vld [vmem:[%s656 + $0x50] sm:$0xff]
    %v668 = vld [vmem:[%s656 + $0x58] sm:$0xff]
    %v669 = vld [vmem:[%s656 + $0x60] sm:$0xff]
    %v670 = vld [vmem:[%s656 + $0x68] sm:$0xff]
    %v671 = vld [vmem:[%s656 + $0x70] sm:$0xff]
    %v672 = vld [vmem:[%s656 + $0x78] sm:$0xff]
    %s673 = scalar_lea.vmem %s3, 1
    %v674 = vld [vmem:[%s673] sm:$0x1]
    %v676 = vlaneseq
    %v677 = vshrl.u32 %v676, 7
    %v678 = vsub.s32 0, %v677
    %v679 = vrot.slane %v674, %v678
    %681 = vmatprep.subr.mxu0 0.0
    %682 = vmatpush1.msra.mxu0 %v657
    %683 = vmatprep.subr.mxu0 0.0
    %684 = vmatpush1.msra.mxu0 %v658
    %685 = vmatprep.subr.mxu0 0.0
    %686 = vmatpush1.msra.mxu0 %v659
    %687 = vmatprep.subr.mxu0 0.0
    %688 = vmatpush1.msra.mxu0 %v660
    %689 = vmatprep.subr.mxu0 0.0
    %690 = vmatpush1.msra.mxu0 %v661
    %691 = vmatprep.subr.mxu0 0.0
    %692 = vmatpush1.msra.mxu0 %v662
    %693 = vmatprep.subr.mxu0 0.0
    %694 = vmatpush1.msra.mxu0 %v663
    %695 = vmatprep.subr.mxu0 0.0
    %696 = vmatpush1.msra.mxu0 %v664
    %697 = vmatprep.subr.mxu0 0.0
    %698 = vmatpush1.msra.mxu0 %v665
    %699 = vmatprep.subr.mxu0 0.0
    %700 = vmatpush1.msra.mxu0 %v666
    %701 = vmatprep.subr.mxu0 0.0
    %702 = vmatpush1.msra.mxu0 %v667
    %703 = vmatprep.subr.mxu0 0.0
    %704 = vmatpush1.msra.mxu0 %v668
    %705 = vmatprep.subr.mxu0 0.0
    %706 = vmatpush1.msra.mxu0 %v669
    %707 = vmatprep.subr.mxu0 0.0
    %708 = vmatpush1.msra.mxu0 %v670
    %709 = vmatprep.subr.mxu0 0.0
    %710 = vmatpush1.msra.mxu0 %v671
    %711 = vmatprep.subr.mxu0 0.0
    %712 = vmatpush1.msra.mxu0 %v672
    %713 = vmatprep.subr.mxu0 0.0
    %714 = vmatpush1.msra.mxu0 0.0
    %715 = vmatprep.subr.mxu0 0.0
    %716 = vmatpush1.msra.mxu0 0.0
    %717 = vmatprep.subr.mxu0 0.0
    %718 = vmatpush1.msra.mxu0 0.0
    %719 = vmatprep.subr.mxu0 0.0
    %720 = vmatpush1.msra.mxu0 0.0
    %721 = vmatprep.subr.mxu0 0.0
    %722 = vmatpush1.msra.mxu0 0.0
    %723 = vmatprep.subr.mxu0 0.0
    %724 = vmatpush1.msra.mxu0 0.0
    %725 = vmatprep.subr.mxu0 0.0
    %726 = vmatpush1.msra.mxu0 0.0
    %727 = vmatprep.subr.mxu0 0.0
    %728 = vmatpush1.msra.mxu0 0.0
    %729 = vmatprep.subr.mxu0 0.0
    %730 = vmatpush1.msra.mxu0 0.0
    %731 = vmatprep.subr.mxu0 0.0
    %732 = vmatpush1.msra.mxu0 0.0
    %733 = vmatprep.subr.mxu0 0.0
    %734 = vmatpush1.msra.mxu0 0.0
    %735 = vmatprep.subr.mxu0 0.0
    %736 = vmatpush1.msra.mxu0 0.0
    %737 = vmatprep.subr.mxu0 0.0
    %738 = vmatpush1.msra.mxu0 0.0
    %739 = vmatprep.subr.mxu0 0.0
    %740 = vmatpush1.msra.mxu0 0.0
    %741 = vmatprep.subr.mxu0 0.0
    %742 = vmatpush1.msra.mxu0 0.0
    %743 = vmatprep.subr.mxu0 0.0
    %744 = vmatpush1.msra.mxu0 0.0
    %745 = vmatprep.mubr.f32.mxu0 0.0
    %746 = vmatmul.mubr.f32.gmra.mrb[0].mxu0 %v652
    %v747 = vpop.f32.mrb[0].mxu0
    %v748 = vadd.f32 %v679, %v747
    %v749 = vpop.f32.mrb[0].mxu0
    %750 = vdwg.mxu0
    %v751 = vmax.f32 %v748, 0.0
    %s752 = scalar_lea.vmem [#allocation7], 256
    %v753 = vld [vmem:[%s752] sm:$0xff]
    %v754 = vld [vmem:[%s752 + $0x8] sm:$0xff]
    %v755 = vld [vmem:[%s752 + $0x10] sm:$0xff]
    %v756 = vld [vmem:[%s752 + $0x18] sm:$0xff]
    %v757 = vld [vmem:[%s752 + $0x20] sm:$0xff]
    %v758 = vld [vmem:[%s752 + $0x28] sm:$0xff]
    %v759 = vld [vmem:[%s752 + $0x30] sm:$0xff]
    %v760 = vld [vmem:[%s752 + $0x38] sm:$0xff]
    %v761 = vld [vmem:[%s752 + $0x40] sm:$0xff]
    %v762 = vld [vmem:[%s752 + $0x48] sm:$0xff]
    %v763 = vld [vmem:[%s752 + $0x50] sm:$0xff]
    %v764 = vld [vmem:[%s752 + $0x58] sm:$0xff]
    %v765 = vld [vmem:[%s752 + $0x60] sm:$0xff]
    %v766 = vld [vmem:[%s752 + $0x68] sm:$0xff]
    %v767 = vld [vmem:[%s752 + $0x70] sm:$0xff]
    %v768 = vld [vmem:[%s752 + $0x78] sm:$0xff]
    %v769 = vld [vmem:[%s752 + $0x80] sm:$0xff]
    %v770 = vld [vmem:[%s752 + $0x88] sm:$0xff]
    %v771 = vld [vmem:[%s752 + $0x90] sm:$0xff]
    %v772 = vld [vmem:[%s752 + $0x98] sm:$0xff]
    %v773 = vld [vmem:[%s752 + $0xa0] sm:$0xff]
    %v774 = vld [vmem:[%s752 + $0xa8] sm:$0xff]
    %v775 = vld [vmem:[%s752 + $0xb0] sm:$0xff]
    %v776 = vld [vmem:[%s752 + $0xb8] sm:$0xff]
    %v777 = vld [vmem:[%s752 + $0xc0] sm:$0xff]
    %v778 = vld [vmem:[%s752 + $0xc8] sm:$0xff]
    %v779 = vld [vmem:[%s752 + $0xd0] sm:$0xff]
    %v780 = vld [vmem:[%s752 + $0xd8] sm:$0xff]
    %v781 = vld [vmem:[%s752 + $0xe0] sm:$0xff]
    %v782 = vld [vmem:[%s752 + $0xe8] sm:$0xff]
    %v783 = vld [vmem:[%s752 + $0xf0] sm:$0xff]
    %v784 = vld [vmem:[%s752 + $0xf8] sm:$0xff]
    %s785 = scalar_lea.vmem %s5, 2
    %v786 = vld [vmem:[%s785] sm:$0x3]
    %v788 = vlaneseq
    %v789 = vshrl.u32 %v788, 7
    %v790 = vsub.s32 0, %v789
    %v791 = vrot.slane %v786, %v790
    %v792 = vlaneseq
    %v793 = vshrl.u32 %v792, 7
    %v794 = vsub.s32 1, %v793
    %v795 = vrot.slane %v786, %v794
    %798 = vmatprep.subr.mxu0 %v754
    %799 = vmatpush1.msra.mxu0 %v753
    %800 = vmatprep.subr.mxu0 %v756
    %801 = vmatpush1.msra.mxu0 %v755
    %802 = vmatprep.subr.mxu0 %v758
    %803 = vmatpush1.msra.mxu0 %v757
    %804 = vmatprep.subr.mxu0 %v760
    %805 = vmatpush1.msra.mxu0 %v759
    %806 = vmatprep.subr.mxu0 %v762
    %807 = vmatpush1.msra.mxu0 %v761
    %808 = vmatprep.subr.mxu0 %v764
    %809 = vmatpush1.msra.mxu0 %v763
    %810 = vmatprep.subr.mxu0 %v766
    %811 = vmatpush1.msra.mxu0 %v765
    %812 = vmatprep.subr.mxu0 %v768
    %813 = vmatpush1.msra.mxu0 %v767
    %814 = vmatprep.subr.mxu0 %v770
    %815 = vmatpush1.msra.mxu0 %v769
    %816 = vmatprep.subr.mxu0 %v772
    %817 = vmatpush1.msra.mxu0 %v771
    %818 = vmatprep.subr.mxu0 %v774
    %819 = vmatpush1.msra.mxu0 %v773
    %820 = vmatprep.subr.mxu0 %v776
    %821 = vmatpush1.msra.mxu0 %v775
    %822 = vmatprep.subr.mxu0 %v778
    %823 = vmatpush1.msra.mxu0 %v777
    %824 = vmatprep.subr.mxu0 %v780
    %825 = vmatpush1.msra.mxu0 %v779
    %826 = vmatprep.subr.mxu0 %v782
    %827 = vmatpush1.msra.mxu0 %v781
    %828 = vmatprep.subr.mxu0 %v784
    %829 = vmatpush1.msra.mxu0 %v783
    %830 = vmatprep.subr.mxu0 0.0
    %831 = vmatpush1.msra.mxu0 0.0
    %832 = vmatprep.subr.mxu0 0.0
    %833 = vmatpush1.msra.mxu0 0.0
    %834 = vmatprep.subr.mxu0 0.0
    %835 = vmatpush1.msra.mxu0 0.0
    %836 = vmatprep.subr.mxu0 0.0
    %837 = vmatpush1.msra.mxu0 0.0
    %838 = vmatprep.subr.mxu0 0.0
    %839 = vmatpush1.msra.mxu0 0.0
    %840 = vmatprep.subr.mxu0 0.0
    %841 = vmatpush1.msra.mxu0 0.0
    %842 = vmatprep.subr.mxu0 0.0
    %843 = vmatpush1.msra.mxu0 0.0
    %844 = vmatprep.subr.mxu0 0.0
    %845 = vmatpush1.msra.mxu0 0.0
    %846 = vmatprep.subr.mxu0 0.0
    %847 = vmatpush1.msra.mxu0 0.0
    %848 = vmatprep.subr.mxu0 0.0
    %849 = vmatpush1.msra.mxu0 0.0
    %850 = vmatprep.subr.mxu0 0.0
    %851 = vmatpush1.msra.mxu0 0.0
    %852 = vmatprep.subr.mxu0 0.0
    %853 = vmatpush1.msra.mxu0 0.0
    %854 = vmatprep.subr.mxu0 0.0
    %855 = vmatpush1.msra.mxu0 0.0
    %856 = vmatprep.subr.mxu0 0.0
    %857 = vmatpush1.msra.mxu0 0.0
    %858 = vmatprep.subr.mxu0 0.0
    %859 = vmatpush1.msra.mxu0 0.0
    %860 = vmatprep.subr.mxu0 0.0
    %861 = vmatpush1.msra.mxu0 0.0
    %862 = vmatprep.mubr.f32.mxu0 0.0
    %863 = vmatmul.mubr.f32.gmra.mrb[0].mxu0 %v751
    %v864 = vpop.f32.mrb[0].mxu0
    %v865 = vadd.f32 %v791, %v864
    %v866 = vpop.f32.mrb[0].mxu0
    %v867 = vadd.f32 %v795, %v866
    %868 = vdwg.mxu0
    %v869 = vmul.f32 %v865, %v459
    %v870 = vtanh.pop %v869
    %v871 = vmul.f32 %v870, 2.0
    %v872 = vmul.f32 %v871, 1.442695
    %v873 = vpow.pop %v872
    %v874 = vmul.f32 %v654, %v873
    %v875 = vadd.f32 %v874, %v867
    %876 = vst [vmem:[#allocation8] sm:$0x3] %v652
    %877 = vst [vmem:[#allocation8 + $0x2] sm:$0x3] %v875
    %v878 = vld [vmem:[%s7] sm:$0x3]
    %v879 = vsel %vm470, %v871, 0.0
    %880 = vadd.xlane.f32.xlu0 %v879
    %v881 = vpop.xlane.xlu0 %880
    %v882 = vadd.f32 %v878, %v881
    %883 = vst.msk [vmem:[%s7] sm:$0x3] %vm69, %v882
    %v884 = vld [vmem:[#allocation8] sm:$0xf]
    %s885 = scalar_lea.vmem [#allocation2], 512
    %v886 = vld [vmem:[%s885] sm:$0xff]
    %v887 = vld [vmem:[%s885 + $0x8] sm:$0xff]
    %v888 = vld [vmem:[%s885 + $0x10] sm:$0xff]
    %v889 = vld [vmem:[%s885 + $0x18] sm:$0xff]
    %v890 = vld [vmem:[%s885 + $0x20] sm:$0xff]
    %v891 = vld [vmem:[%s885 + $0x28] sm:$0xff]
    %v892 = vld [vmem:[%s885 + $0x30] sm:$0xff]
    %v893 = vld [vmem:[%s885 + $0x38] sm:$0xff]
    %v894 = vld [vmem:[%s885 + $0x40] sm:$0xff]
    %v895 = vld [vmem:[%s885 + $0x48] sm:$0xff]
    %v896 = vld [vmem:[%s885 + $0x50] sm:$0xff]
    %v897 = vld [vmem:[%s885 + $0x58] sm:$0xff]
    %v898 = vld [vmem:[%s885 + $0x60] sm:$0xff]
    %v899 = vld [vmem:[%s885 + $0x68] sm:$0xff]
    %v900 = vld [vmem:[%s885 + $0x70] sm:$0xff]
    %v901 = vld [vmem:[%s885 + $0x78] sm:$0xff]
    %v902 = vld [vmem:[%s885 + $0x80] sm:$0xff]
    %v903 = vld [vmem:[%s885 + $0x88] sm:$0xff]
    %v904 = vld [vmem:[%s885 + $0x90] sm:$0xff]
    %v905 = vld [vmem:[%s885 + $0x98] sm:$0xff]
    %v906 = vld [vmem:[%s885 + $0xa0] sm:$0xff]
    %v907 = vld [vmem:[%s885 + $0xa8] sm:$0xff]
    %v908 = vld [vmem:[%s885 + $0xb0] sm:$0xff]
    %v909 = vld [vmem:[%s885 + $0xb8] sm:$0xff]
    %v910 = vld [vmem:[%s885 + $0xc0] sm:$0xff]
    %v911 = vld [vmem:[%s885 + $0xc8] sm:$0xff]
    %v912 = vld [vmem:[%s885 + $0xd0] sm:$0xff]
    %v913 = vld [vmem:[%s885 + $0xd8] sm:$0xff]
    %v914 = vld [vmem:[%s885 + $0xe0] sm:$0xff]
    %v915 = vld [vmem:[%s885 + $0xe8] sm:$0xff]
    %v916 = vld [vmem:[%s885 + $0xf0] sm:$0xff]
    %v917 = vld [vmem:[%s885 + $0xf8] sm:$0xff]
    %v918 = vunpack.c.l.bf16 %v886
    %v919 = vunpack.c.h.bf16 %v886
    %v920 = vunpack.c.l.bf16 %v887
    %v921 = vunpack.c.h.bf16 %v887
    %v922 = vunpack.c.l.bf16 %v888
    %v923 = vunpack.c.h.bf16 %v888
    %v924 = vunpack.c.l.bf16 %v889
    %v925 = vunpack.c.h.bf16 %v889
    %v926 = vunpack.c.l.bf16 %v890
    %v927 = vunpack.c.h.bf16 %v890
    %v928 = vunpack.c.l.bf16 %v891
    %v929 = vunpack.c.h.bf16 %v891
    %v930 = vunpack.c.l.bf16 %v892
    %v931 = vunpack.c.h.bf16 %v892
    %v932 = vunpack.c.l.bf16 %v893
    %v933 = vunpack.c.h.bf16 %v893
    %v934 = vunpack.c.l.bf16 %v894
    %v935 = vunpack.c.h.bf16 %v894
    %v936 = vunpack.c.l.bf16 %v895
    %v937 = vunpack.c.h.bf16 %v895
    %v938 = vunpack.c.l.bf16 %v896
    %v939 = vunpack.c.h.bf16 %v896
    %v940 = vunpack.c.l.bf16 %v897
    %v941 = vunpack.c.h.bf16 %v897
    %v942 = vunpack.c.l.bf16 %v898
    %v943 = vunpack.c.h.bf16 %v898
    %v944 = vunpack.c.l.bf16 %v899
    %v945 = vunpack.c.h.bf16 %v899
    %v946 = vunpack.c.l.bf16 %v900
    %v947 = vunpack.c.h.bf16 %v900
    %v948 = vunpack.c.l.bf16 %v901
    %v949 = vunpack.c.h.bf16 %v901
    %v950 = vunpack.c.l.bf16 %v902
    %v951 = vunpack.c.h.bf16 %v902
    %v952 = vunpack.c.l.bf16 %v903
    %v953 = vunpack.c.h.bf16 %v903
    %v954 = vunpack.c.l.bf16 %v904
    %v955 = vunpack.c.h.bf16 %v904
    %v956 = vunpack.c.l.bf16 %v905
    %v957 = vunpack.c.h.bf16 %v905
    %v958 = vunpack.c.l.bf16 %v906
    %v959 = vunpack.c.h.bf16 %v906
    %v960 = vunpack.c.l.bf16 %v907
    %v961 = vunpack.c.h.bf16 %v907
    %v962 = vunpack.c.l.bf16 %v908
    %v963 = vunpack.c.h.bf16 %v908
    %v964 = vunpack.c.l.bf16 %v909
    %v965 = vunpack.c.h.bf16 %v909
    %v966 = vunpack.c.l.bf16 %v910
    %v967 = vunpack.c.h.bf16 %v910
    %v968 = vunpack.c.l.bf16 %v911
    %v969 = vunpack.c.h.bf16 %v911
    %v970 = vunpack.c.l.bf16 %v912
    %v971 = vunpack.c.h.bf16 %v912
    %v972 = vunpack.c.l.bf16 %v913
    %v973 = vunpack.c.h.bf16 %v913
    %v974 = vunpack.c.l.bf16 %v914
    %v975 = vunpack.c.h.bf16 %v914
    %v976 = vunpack.c.l.bf16 %v915
    %v977 = vunpack.c.h.bf16 %v915
    %v978 = vunpack.c.l.bf16 %v916
    %v979 = vunpack.c.h.bf16 %v916
    %v980 = vunpack.c.l.bf16 %v917
    %v981 = vunpack.c.h.bf16 %v917
    %v984 = vunpack.c.l.s4 1983009808
    %v985 = vunpack.c.0.s8 %v984
    %v986 = vlaneseq
    %v987 = vshrl.u32 %v986, 7
    %v988 = vsub.s32 %v985, %v987
    %v989 = vrot.slane %v884, %v988
    %v990 = vcombine.high %v989, %v989
    %993 = vmatprep.subr.mxu0 %v919
    %994 = vmatpush1.msra.mxu0 %v918
    %995 = vmatprep.subr.mxu0 %v921
    %996 = vmatpush1.msra.mxu0 %v920
    %997 = vmatprep.subr.mxu0 %v923
    %998 = vmatpush1.msra.mxu0 %v922
    %999 = vmatprep.subr.mxu0 %v925
    %1000 = vmatpush1.msra.mxu0 %v924
    %1001 = vmatprep.subr.mxu0 %v927
    %1002 = vmatpush1.msra.mxu0 %v926
    %1003 = vmatprep.subr.mxu0 %v929
    %1004 = vmatpush1.msra.mxu0 %v928
    %1005 = vmatprep.subr.mxu0 %v931
    %1006 = vmatpush1.msra.mxu0 %v930
    %1007 = vmatprep.subr.mxu0 %v933
    %1008 = vmatpush1.msra.mxu0 %v932
    %1009 = vmatprep.subr.mxu0 %v935
    %1010 = vmatpush1.msra.mxu0 %v934
    %1011 = vmatprep.subr.mxu0 %v937
    %1012 = vmatpush1.msra.mxu0 %v936
    %1013 = vmatprep.subr.mxu0 %v939
    %1014 = vmatpush1.msra.mxu0 %v938
    %1015 = vmatprep.subr.mxu0 %v941
    %1016 = vmatpush1.msra.mxu0 %v940
    %1017 = vmatprep.subr.mxu0 %v943
    %1018 = vmatpush1.msra.mxu0 %v942
    %1019 = vmatprep.subr.mxu0 %v945
    %1020 = vmatpush1.msra.mxu0 %v944
    %1021 = vmatprep.subr.mxu0 %v947
    %1022 = vmatpush1.msra.mxu0 %v946
    %1023 = vmatprep.subr.mxu0 %v949
    %1024 = vmatpush1.msra.mxu0 %v948
    %1025 = vmatprep.subr.mxu0 %v951
    %1026 = vmatpush1.msra.mxu0 %v950
    %1027 = vmatprep.subr.mxu0 %v953
    %1028 = vmatpush1.msra.mxu0 %v952
    %1029 = vmatprep.subr.mxu0 %v955
    %1030 = vmatpush1.msra.mxu0 %v954
    %1031 = vmatprep.subr.mxu0 %v957
    %1032 = vmatpush1.msra.mxu0 %v956
    %1033 = vmatprep.subr.mxu0 %v959
    %1034 = vmatpush1.msra.mxu0 %v958
    %1035 = vmatprep.subr.mxu0 %v961
    %1036 = vmatpush1.msra.mxu0 %v960
    %1037 = vmatprep.subr.mxu0 %v963
    %1038 = vmatpush1.msra.mxu0 %v962
    %1039 = vmatprep.subr.mxu0 %v965
    %1040 = vmatpush1.msra.mxu0 %v964
    %1041 = vmatprep.subr.mxu0 %v967
    %1042 = vmatpush1.msra.mxu0 %v966
    %1043 = vmatprep.subr.mxu0 %v969
    %1044 = vmatpush1.msra.mxu0 %v968
    %1045 = vmatprep.subr.mxu0 %v971
    %1046 = vmatpush1.msra.mxu0 %v970
    %1047 = vmatprep.subr.mxu0 %v973
    %1048 = vmatpush1.msra.mxu0 %v972
    %1049 = vmatprep.subr.mxu0 %v975
    %1050 = vmatpush1.msra.mxu0 %v974
    %1051 = vmatprep.subr.mxu0 %v977
    %1052 = vmatpush1.msra.mxu0 %v976
    %1053 = vmatprep.subr.mxu0 %v979
    %1054 = vmatpush1.msra.mxu0 %v978
    %1055 = vmatprep.subr.mxu0 %v981
    %1056 = vmatpush1.msra.mxu0 %v980
    %1057 = vmatprep.mubr.f32.mxu0 %v990
    %1058 = vmatmul.mubr.f32.gmra.mrb[0].mxu0 %v989
    %v1059 = vpop.f32.mrb[0].mxu0
    %v1060 = vadd.f32 0.0, %v1059
    %v1061 = vpop.f32.mrb[0].mxu0
    %v1062 = vadd.f32 0.0, %v1061
    %1063 = vdwg.mxu0
    %s1064 = scalar_lea.vmem [#allocation5], 256
    %v1065 = vld [vmem:[%s1064] sm:$0xff]
    %v1066 = vld [vmem:[%s1064 + $0x8] sm:$0xff]
    %v1067 = vld [vmem:[%s1064 + $0x10] sm:$0xff]
    %v1068 = vld [vmem:[%s1064 + $0x18] sm:$0xff]
    %v1069 = vld [vmem:[%s1064 + $0x20] sm:$0xff]
    %v1070 = vld [vmem:[%s1064 + $0x28] sm:$0xff]
    %v1071 = vld [vmem:[%s1064 + $0x30] sm:$0xff]
    %v1072 = vld [vmem:[%s1064 + $0x38] sm:$0xff]
    %v1073 = vld [vmem:[%s1064 + $0x40] sm:$0xff]
    %v1074 = vld [vmem:[%s1064 + $0x48] sm:$0xff]
    %v1075 = vld [vmem:[%s1064 + $0x50] sm:$0xff]
    %v1076 = vld [vmem:[%s1064 + $0x58] sm:$0xff]
    %v1077 = vld [vmem:[%s1064 + $0x60] sm:$0xff]
    %v1078 = vld [vmem:[%s1064 + $0x68] sm:$0xff]
    %v1079 = vld [vmem:[%s1064 + $0x70] sm:$0xff]
    %v1080 = vld [vmem:[%s1064 + $0x78] sm:$0xff]
    %s1081 = scalar_lea.vmem %s3, 2
    %v1082 = vld [vmem:[%s1081] sm:$0x1]
    %v1084 = vlaneseq
    %v1085 = vshrl.u32 %v1084, 7
    %v1086 = vsub.s32 0, %v1085
    %v1087 = vrot.slane %v1082, %v1086
    %1089 = vmatprep.subr.mxu0 0.0
    %1090 = vmatpush1.msra.mxu0 %v1065
    %1091 = vmatprep.subr.mxu0 0.0
    %1092 = vmatpush1.msra.mxu0 %v1066
    %1093 = vmatprep.subr.mxu0 0.0
    %1094 = vmatpush1.msra.mxu0 %v1067
    %1095 = vmatprep.subr.mxu0 0.0
    %1096 = vmatpush1.msra.mxu0 %v1068
    %1097 = vmatprep.subr.mxu0 0.0
    %1098 = vmatpush1.msra.mxu0 %v1069
    %1099 = vmatprep.subr.mxu0 0.0
    %1100 = vmatpush1.msra.mxu0 %v1070
    %1101 = vmatprep.subr.mxu0 0.0
    %1102 = vmatpush1.msra.mxu0 %v1071
    %1103 = vmatprep.subr.mxu0 0.0
    %1104 = vmatpush1.msra.mxu0 %v1072
    %1105 = vmatprep.subr.mxu0 0.0
    %1106 = vmatpush1.msra.mxu0 %v1073
    %1107 = vmatprep.subr.mxu0 0.0
    %1108 = vmatpush1.msra.mxu0 %v1074
    %1109 = vmatprep.subr.mxu0 0.0
    %1110 = vmatpush1.msra.mxu0 %v1075
    %1111 = vmatprep.subr.mxu0 0.0
    %1112 = vmatpush1.msra.mxu0 %v1076
    %1113 = vmatprep.subr.mxu0 0.0
    %1114 = vmatpush1.msra.mxu0 %v1077
    %1115 = vmatprep.subr.mxu0 0.0
    %1116 = vmatpush1.msra.mxu0 %v1078
    %1117 = vmatprep.subr.mxu0 0.0
    %1118 = vmatpush1.msra.mxu0 %v1079
    %1119 = vmatprep.subr.mxu0 0.0
    %1120 = vmatpush1.msra.mxu0 %v1080
    %1121 = vmatprep.subr.mxu0 0.0
    %1122 = vmatpush1.msra.mxu0 0.0
    %1123 = vmatprep.subr.mxu0 0.0
    %1124 = vmatpush1.msra.mxu0 0.0
    %1125 = vmatprep.subr.mxu0 0.0
    %1126 = vmatpush1.msra.mxu0 0.0
    %1127 = vmatprep.subr.mxu0 0.0
    %1128 = vmatpush1.msra.mxu0 0.0
    %1129 = vmatprep.subr.mxu0 0.0
    %1130 = vmatpush1.msra.mxu0 0.0
    %1131 = vmatprep.subr.mxu0 0.0
    %1132 = vmatpush1.msra.mxu0 0.0
    %1133 = vmatprep.subr.mxu0 0.0
    %1134 = vmatpush1.msra.mxu0 0.0
    %1135 = vmatprep.subr.mxu0 0.0
    %1136 = vmatpush1.msra.mxu0 0.0
    %1137 = vmatprep.subr.mxu0 0.0
    %1138 = vmatpush1.msra.mxu0 0.0
    %1139 = vmatprep.subr.mxu0 0.0
    %1140 = vmatpush1.msra.mxu0 0.0
    %1141 = vmatprep.subr.mxu0 0.0
    %1142 = vmatpush1.msra.mxu0 0.0
    %1143 = vmatprep.subr.mxu0 0.0
    %1144 = vmatpush1.msra.mxu0 0.0
    %1145 = vmatprep.subr.mxu0 0.0
    %1146 = vmatpush1.msra.mxu0 0.0
    %1147 = vmatprep.subr.mxu0 0.0
    %1148 = vmatpush1.msra.mxu0 0.0
    %1149 = vmatprep.subr.mxu0 0.0
    %1150 = vmatpush1.msra.mxu0 0.0
    %1151 = vmatprep.subr.mxu0 0.0
    %1152 = vmatpush1.msra.mxu0 0.0
    %1153 = vmatprep.mubr.f32.mxu0 0.0
    %1154 = vmatmul.mubr.f32.gmra.mrb[0].mxu0 %v1060
    %v1155 = vpop.f32.mrb[0].mxu0
    %v1156 = vadd.f32 %v1087, %v1155
    %v1157 = vpop.f32.mrb[0].mxu0
    %1158 = vdwg.mxu0
    %v1159 = vmax.f32 %v1156, 0.0
    %s1160 = scalar_lea.vmem [#allocation7], 512
    %v1161 = vld [vmem:[%s1160] sm:$0xff]
    %v1162 = vld [vmem:[%s1160 + $0x8] sm:$0xff]
    %v1163 = vld [vmem:[%s1160 + $0x10] sm:$0xff]
    %v1164 = vld [vmem:[%s1160 + $0x18] sm:$0xff]
    %v1165 = vld [vmem:[%s1160 + $0x20] sm:$0xff]
    %v1166 = vld [vmem:[%s1160 + $0x28] sm:$0xff]
    %v1167 = vld [vmem:[%s1160 + $0x30] sm:$0xff]
    %v1168 = vld [vmem:[%s1160 + $0x38] sm:$0xff]
    %v1169 = vld [vmem:[%s1160 + $0x40] sm:$0xff]
    %v1170 = vld [vmem:[%s1160 + $0x48] sm:$0xff]
    %v1171 = vld [vmem:[%s1160 + $0x50] sm:$0xff]
    %v1172 = vld [vmem:[%s1160 + $0x58] sm:$0xff]
    %v1173 = vld [vmem:[%s1160 + $0x60] sm:$0xff]
    %v1174 = vld [vmem:[%s1160 + $0x68] sm:$0xff]
    %v1175 = vld [vmem:[%s1160 + $0x70] sm:$0xff]
    %v1176 = vld [vmem:[%s1160 + $0x78] sm:$0xff]
    %v1177 = vld [vmem:[%s1160 + $0x80] sm:$0xff]
    %v1178 = vld [vmem:[%s1160 + $0x88] sm:$0xff]
    %v1179 = vld [vmem:[%s1160 + $0x90] sm:$0xff]
    %v1180 = vld [vmem:[%s1160 + $0x98] sm:$0xff]
    %v1181 = vld [vmem:[%s1160 + $0xa0] sm:$0xff]
    %v1182 = vld [vmem:[%s1160 + $0xa8] sm:$0xff]
    %v1183 = vld [vmem:[%s1160 + $0xb0] sm:$0xff]
    %v1184 = vld [vmem:[%s1160 + $0xb8] sm:$0xff]
    %v1185 = vld [vmem:[%s1160 + $0xc0] sm:$0xff]
    %v1186 = vld [vmem:[%s1160 + $0xc8] sm:$0xff]
    %v1187 = vld [vmem:[%s1160 + $0xd0] sm:$0xff]
    %v1188 = vld [vmem:[%s1160 + $0xd8] sm:$0xff]
    %v1189 = vld [vmem:[%s1160 + $0xe0] sm:$0xff]
    %v1190 = vld [vmem:[%s1160 + $0xe8] sm:$0xff]
    %v1191 = vld [vmem:[%s1160 + $0xf0] sm:$0xff]
    %v1192 = vld [vmem:[%s1160 + $0xf8] sm:$0xff]
    %s1193 = scalar_lea.vmem %s5, 4
    %v1194 = vld [vmem:[%s1193] sm:$0x3]
    %v1196 = vlaneseq
    %v1197 = vshrl.u32 %v1196, 7
    %v1198 = vsub.s32 0, %v1197
    %v1199 = vrot.slane %v1194, %v1198
    %v1200 = vlaneseq
    %v1201 = vshrl.u32 %v1200, 7
    %v1202 = vsub.s32 1, %v1201
    %v1203 = vrot.slane %v1194, %v1202
    %1206 = vmatprep.subr.mxu0 %v1162
    %1207 = vmatpush1.msra.mxu0 %v1161
    %1208 = vmatprep.subr.mxu0 %v1164
    %1209 = vmatpush1.msra.mxu0 %v1163
    %1210 = vmatprep.subr.mxu0 %v1166
    %1211 = vmatpush1.msra.mxu0 %v1165
    %1212 = vmatprep.subr.mxu0 %v1168
    %1213 = vmatpush1.msra.mxu0 %v1167
    %1214 = vmatprep.subr.mxu0 %v1170
    %1215 = vmatpush1.msra.mxu0 %v1169
    %1216 = vmatprep.subr.mxu0 %v1172
    %1217 = vmatpush1.msra.mxu0 %v1171
    %1218 = vmatprep.subr.mxu0 %v1174
    %1219 = vmatpush1.msra.mxu0 %v1173
    %1220 = vmatprep.subr.mxu0 %v1176
    %1221 = vmatpush1.msra.mxu0 %v1175
    %1222 = vmatprep.subr.mxu0 %v1178
    %1223 = vmatpush1.msra.mxu0 %v1177
    %1224 = vmatprep.subr.mxu0 %v1180
    %1225 = vmatpush1.msra.mxu0 %v1179
    %1226 = vmatprep.subr.mxu0 %v1182
    %1227 = vmatpush1.msra.mxu0 %v1181
    %1228 = vmatprep.subr.mxu0 %v1184
    %1229 = vmatpush1.msra.mxu0 %v1183
    %1230 = vmatprep.subr.mxu0 %v1186
    %1231 = vmatpush1.msra.mxu0 %v1185
    %1232 = vmatprep.subr.mxu0 %v1188
    %1233 = vmatpush1.msra.mxu0 %v1187
    %1234 = vmatprep.subr.mxu0 %v1190
    %1235 = vmatpush1.msra.mxu0 %v1189
    %1236 = vmatprep.subr.mxu0 %v1192
    %1237 = vmatpush1.msra.mxu0 %v1191
    %1238 = vmatprep.subr.mxu0 0.0
    %1239 = vmatpush1.msra.mxu0 0.0
    %1240 = vmatprep.subr.mxu0 0.0
    %1241 = vmatpush1.msra.mxu0 0.0
    %1242 = vmatprep.subr.mxu0 0.0
    %1243 = vmatpush1.msra.mxu0 0.0
    %1244 = vmatprep.subr.mxu0 0.0
    %1245 = vmatpush1.msra.mxu0 0.0
    %1246 = vmatprep.subr.mxu0 0.0
    %1247 = vmatpush1.msra.mxu0 0.0
    %1248 = vmatprep.subr.mxu0 0.0
    %1249 = vmatpush1.msra.mxu0 0.0
    %1250 = vmatprep.subr.mxu0 0.0
    %1251 = vmatpush1.msra.mxu0 0.0
    %1252 = vmatprep.subr.mxu0 0.0
    %1253 = vmatpush1.msra.mxu0 0.0
    %1254 = vmatprep.subr.mxu0 0.0
    %1255 = vmatpush1.msra.mxu0 0.0
    %1256 = vmatprep.subr.mxu0 0.0
    %1257 = vmatpush1.msra.mxu0 0.0
    %1258 = vmatprep.subr.mxu0 0.0
    %1259 = vmatpush1.msra.mxu0 0.0
    %1260 = vmatprep.subr.mxu0 0.0
    %1261 = vmatpush1.msra.mxu0 0.0
    %1262 = vmatprep.subr.mxu0 0.0
    %1263 = vmatpush1.msra.mxu0 0.0
    %1264 = vmatprep.subr.mxu0 0.0
    %1265 = vmatpush1.msra.mxu0 0.0
    %1266 = vmatprep.subr.mxu0 0.0
    %1267 = vmatpush1.msra.mxu0 0.0
    %1268 = vmatprep.subr.mxu0 0.0
    %1269 = vmatpush1.msra.mxu0 0.0
    %1270 = vmatprep.mubr.f32.mxu0 0.0
    %1271 = vmatmul.mubr.f32.gmra.mrb[0].mxu0 %v1159
    %v1272 = vpop.f32.mrb[0].mxu0
    %v1273 = vadd.f32 %v1199, %v1272
    %v1274 = vpop.f32.mrb[0].mxu0
    %v1275 = vadd.f32 %v1203, %v1274
    %1276 = vdwg.mxu0
    %v1277 = vmul.f32 %v1273, %v459
    %v1278 = vtanh.pop %v1277
    %v1279 = vmul.f32 %v1278, 2.0
    %v1280 = vmul.f32 %v1279, 1.442695
    %v1281 = vpow.pop %v1280
    %v1282 = vmul.f32 %v1062, %v1281
    %v1283 = vadd.f32 %v1282, %v1275
    %1284 = vst [vmem:[#allocation8] sm:$0x3] %v1060
    %1285 = vst [vmem:[#allocation8 + $0x2] sm:$0x3] %v1283
    %v1286 = vld [vmem:[%s7] sm:$0x3]
    %v1287 = vsel %vm470, %v1279, 0.0
    %1288 = vadd.xlane.f32.xlu0 %v1287
    %v1289 = vpop.xlane.xlu0 %1288
    %v1290 = vadd.f32 %v1286, %v1289
    %1291 = vst.msk [vmem:[%s7] sm:$0x3] %vm69, %v1290
    %v1292 = vld [vmem:[#allocation8] sm:$0xf]
    %s1293 = scalar_lea.vmem [#allocation2], 768
    %v1294 = vld [vmem:[%s1293] sm:$0xff]
    %v1295 = vld [vmem:[%s1293 + $0x8] sm:$0xff]
    %v1296 = vld [vmem:[%s1293 + $0x10] sm:$0xff]
    %v1297 = vld [vmem:[%s1293 + $0x18] sm:$0xff]
    %v1298 = vld [vmem:[%s1293 + $0x20] sm:$0xff]
    %v1299 = vld [vmem:[%s1293 + $0x28] sm:$0xff]
    %v1300 = vld [vmem:[%s1293 + $0x30] sm:$0xff]
    %v1301 = vld [vmem:[%s1293 + $0x38] sm:$0xff]
    %v1302 = vld [vmem:[%s1293 + $0x40] sm:$0xff]
    %v1303 = vld [vmem:[%s1293 + $0x48] sm:$0xff]
    %v1304 = vld [vmem:[%s1293 + $0x50] sm:$0xff]
    %v1305 = vld [vmem:[%s1293 + $0x58] sm:$0xff]
    %v1306 = vld [vmem:[%s1293 + $0x60] sm:$0xff]
    %v1307 = vld [vmem:[%s1293 + $0x68] sm:$0xff]
    %v1308 = vld [vmem:[%s1293 + $0x70] sm:$0xff]
    %v1309 = vld [vmem:[%s1293 + $0x78] sm:$0xff]
    %v1310 = vld [vmem:[%s1293 + $0x80] sm:$0xff]
    %v1311 = vld [vmem:[%s1293 + $0x88] sm:$0xff]
    %v1312 = vld [vmem:[%s1293 + $0x90] sm:$0xff]
    %v1313 = vld [vmem:[%s1293 + $0x98] sm:$0xff]
    %v1314 = vld [vmem:[%s1293 + $0xa0] sm:$0xff]
    %v1315 = vld [vmem:[%s1293 + $0xa8] sm:$0xff]
    %v1316 = vld [vmem:[%s1293 + $0xb0] sm:$0xff]
    %v1317 = vld [vmem:[%s1293 + $0xb8] sm:$0xff]
    %v1318 = vld [vmem:[%s1293 + $0xc0] sm:$0xff]
    %v1319 = vld [vmem:[%s1293 + $0xc8] sm:$0xff]
    %v1320 = vld [vmem:[%s1293 + $0xd0] sm:$0xff]
    %v1321 = vld [vmem:[%s1293 + $0xd8] sm:$0xff]
    %v1322 = vld [vmem:[%s1293 + $0xe0] sm:$0xff]
    %v1323 = vld [vmem:[%s1293 + $0xe8] sm:$0xff]
    %v1324 = vld [vmem:[%s1293 + $0xf0] sm:$0xff]
    %v1325 = vld [vmem:[%s1293 + $0xf8] sm:$0xff]
    %v1326 = vunpack.c.l.bf16 %v1294
    %v1327 = vunpack.c.h.bf16 %v1294
    %v1328 = vunpack.c.l.bf16 %v1295
    %v1329 = vunpack.c.h.bf16 %v1295
    %v1330 = vunpack.c.l.bf16 %v1296
    %v1331 = vunpack.c.h.bf16 %v1296
    %v1332 = vunpack.c.l.bf16 %v1297
    %v1333 = vunpack.c.h.bf16 %v1297
    %v1334 = vunpack.c.l.bf16 %v1298
    %v1335 = vunpack.c.h.bf16 %v1298
    %v1336 = vunpack.c.l.bf16 %v1299
    %v1337 = vunpack.c.h.bf16 %v1299
    %v1338 = vunpack.c.l.bf16 %v1300
    %v1339 = vunpack.c.h.bf16 %v1300
    %v1340 = vunpack.c.l.bf16 %v1301
    %v1341 = vunpack.c.h.bf16 %v1301
    %v1342 = vunpack.c.l.bf16 %v1302
    %v1343 = vunpack.c.h.bf16 %v1302
    %v1344 = vunpack.c.l.bf16 %v1303
    %v1345 = vunpack.c.h.bf16 %v1303
    %v1346 = vunpack.c.l.bf16 %v1304
    %v1347 = vunpack.c.h.bf16 %v1304
    %v1348 = vunpack.c.l.bf16 %v1305
    %v1349 = vunpack.c.h.bf16 %v1305
    %v1350 = vunpack.c.l.bf16 %v1306
    %v1351 = vunpack.c.h.bf16 %v1306
    %v1352 = vunpack.c.l.bf16 %v1307
    %v1353 = vunpack.c.h.bf16 %v1307
    %v1354 = vunpack.c.l.bf16 %v1308
    %v1355 = vunpack.c.h.bf16 %v1308
    %v1356 = vunpack.c.l.bf16 %v1309
    %v1357 = vunpack.c.h.bf16 %v1309
    %v1358 = vunpack.c.l.bf16 %v1310
    %v1359 = vunpack.c.h.bf16 %v1310
    %v1360 = vunpack.c.l.bf16 %v1311
    %v1361 = vunpack.c.h.bf16 %v1311
    %v1362 = vunpack.c.l.bf16 %v1312
    %v1363 = vunpack.c.h.bf16 %v1312
    %v1364 = vunpack.c.l.bf16 %v1313
    %v1365 = vunpack.c.h.bf16 %v1313
    %v1366 = vunpack.c.l.bf16 %v1314
    %v1367 = vunpack.c.h.bf16 %v1314
    %v1368 = vunpack.c.l.bf16 %v1315
    %v1369 = vunpack.c.h.bf16 %v1315
    %v1370 = vunpack.c.l.bf16 %v1316
    %v1371 = vunpack.c.h.bf16 %v1316
    %v1372 = vunpack.c.l.bf16 %v1317
    %v1373 = vunpack.c.h.bf16 %v1317
    %v1374 = vunpack.c.l.bf16 %v1318
    %v1375 = vunpack.c.h.bf16 %v1318
    %v1376 = vunpack.c.l.bf16 %v1319
    %v1377 = vunpack.c.h.bf16 %v1319
    %v1378 = vunpack.c.l.bf16 %v1320
    %v1379 = vunpack.c.h.bf16 %v1320
    %v1380 = vunpack.c.l.bf16 %v1321
    %v1381 = vunpack.c.h.bf16 %v1321
    %v1382 = vunpack.c.l.bf16 %v1322
    %v1383 = vunpack.c.h.bf16 %v1322
    %v1384 = vunpack.c.l.bf16 %v1323
    %v1385 = vunpack.c.h.bf16 %v1323
    %v1386 = vunpack.c.l.bf16 %v1324
    %v1387 = vunpack.c.h.bf16 %v1324
    %v1388 = vunpack.c.l.bf16 %v1325
    %v1389 = vunpack.c.h.bf16 %v1325
    %v1392 = vunpack.c.l.s4 1983009808
    %v1393 = vunpack.c.0.s8 %v1392
    %v1394 = vlaneseq
    %v1395 = vshrl.u32 %v1394, 7
    %v1396 = vsub.s32 %v1393, %v1395
    %v1397 = vrot.slane %v1292, %v1396
    %v1398 = vcombine.high %v1397, %v1397
    %1401 = vmatprep.subr.mxu0 %v1327
    %1402 = vmatpush1.msra.mxu0 %v1326
    %1403 = vmatprep.subr.mxu0 %v1329
    %1404 = vmatpush1.msra.mxu0 %v1328
    %1405 = vmatprep.subr.mxu0 %v1331
    %1406 = vmatpush1.msra.mxu0 %v1330
    %1407 = vmatprep.subr.mxu0 %v1333
    %1408 = vmatpush1.msra.mxu0 %v1332
    %1409 = vmatprep.subr.mxu0 %v1335
    %1410 = vmatpush1.msra.mxu0 %v1334
    %1411 = vmatprep.subr.mxu0 %v1337
    %1412 = vmatpush1.msra.mxu0 %v1336
    %1413 = vmatprep.subr.mxu0 %v1339
    %1414 = vmatpush1.msra.mxu0 %v1338
    %1415 = vmatprep.subr.mxu0 %v1341
    %1416 = vmatpush1.msra.mxu0 %v1340
    %1417 = vmatprep.subr.mxu0 %v1343
    %1418 = vmatpush1.msra.mxu0 %v1342
    %1419 = vmatprep.subr.mxu0 %v1345
    %1420 = vmatpush1.msra.mxu0 %v1344
    %1421 = vmatprep.subr.mxu0 %v1347
    %1422 = vmatpush1.msra.mxu0 %v1346
    %1423 = vmatprep.subr.mxu0 %v1349
    %1424 = vmatpush1.msra.mxu0 %v1348
    %1425 = vmatprep.subr.mxu0 %v1351
    %1426 = vmatpush1.msra.mxu0 %v1350
    %1427 = vmatprep.subr.mxu0 %v1353
    %1428 = vmatpush1.msra.mxu0 %v1352
    %1429 = vmatprep.subr.mxu0 %v1355
    %1430 = vmatpush1.msra.mxu0 %v1354
    %1431 = vmatprep.subr.mxu0 %v1357
    %1432 = vmatpush1.msra.mxu0 %v1356
    %1433 = vmatprep.subr.mxu0 %v1359
    %1434 = vmatpush1.msra.mxu0 %v1358
    %1435 = vmatprep.subr.mxu0 %v1361
    %1436 = vmatpush1.msra.mxu0 %v1360
    %1437 = vmatprep.subr.mxu0 %v1363
    %1438 = vmatpush1.msra.mxu0 %v1362
    %1439 = vmatprep.subr.mxu0 %v1365
    %1440 = vmatpush1.msra.mxu0 %v1364
    %1441 = vmatprep.subr.mxu0 %v1367
    %1442 = vmatpush1.msra.mxu0 %v1366
    %1443 = vmatprep.subr.mxu0 %v1369
    %1444 = vmatpush1.msra.mxu0 %v1368
    %1445 = vmatprep.subr.mxu0 %v1371
    %1446 = vmatpush1.msra.mxu0 %v1370
    %1447 = vmatprep.subr.mxu0 %v1373
    %1448 = vmatpush1.msra.mxu0 %v1372
    %1449 = vmatprep.subr.mxu0 %v1375
    %1450 = vmatpush1.msra.mxu0 %v1374
    %1451 = vmatprep.subr.mxu0 %v1377
    %1452 = vmatpush1.msra.mxu0 %v1376
    %1453 = vmatprep.subr.mxu0 %v1379
    %1454 = vmatpush1.msra.mxu0 %v1378
    %1455 = vmatprep.subr.mxu0 %v1381
    %1456 = vmatpush1.msra.mxu0 %v1380
    %1457 = vmatprep.subr.mxu0 %v1383
    %1458 = vmatpush1.msra.mxu0 %v1382
    %1459 = vmatprep.subr.mxu0 %v1385
    %1460 = vmatpush1.msra.mxu0 %v1384
    %1461 = vmatprep.subr.mxu0 %v1387
    %1462 = vmatpush1.msra.mxu0 %v1386
    %1463 = vmatprep.subr.mxu0 %v1389
    %1464 = vmatpush1.msra.mxu0 %v1388
    %1465 = vmatprep.mubr.f32.mxu0 %v1398
    %1466 = vmatmul.mubr.f32.gmra.mrb[0].mxu0 %v1397
    %v1467 = vpop.f32.mrb[0].mxu0
    %v1468 = vadd.f32 0.0, %v1467
    %v1469 = vpop.f32.mrb[0].mxu0
    %v1470 = vadd.f32 0.0, %v1469
    %1471 = vdwg.mxu0
    %s1472 = scalar_lea.vmem [#allocation5], 384
    %v1473 = vld [vmem:[%s1472] sm:$0xff]
    %v1474 = vld [vmem:[%s1472 + $0x8] sm:$0xff]
    %v1475 = vld [vmem:[%s1472 + $0x10] sm:$0xff]
    %v1476 = vld [vmem:[%s1472 + $0x18] sm:$0xff]
    %v1477 = vld [vmem:[%s1472 + $0x20] sm:$0xff]
    %v1478 = vld [vmem:[%s1472 + $0x28] sm:$0xff]
    %v1479 = vld [vmem:[%s1472 + $0x30] sm:$0xff]
    %v1480 = vld [vmem:[%s1472 + $0x38] sm:$0xff]
    %v1481 = vld [vmem:[%s1472 + $0x40] sm:$0xff]
    %v1482 = vld [vmem:[%s1472 + $0x48] sm:$0xff]
    %v1483 = vld [vmem:[%s1472 + $0x50] sm:$0xff]
    %v1484 = vld [vmem:[%s1472 + $0x58] sm:$0xff]
    %v1485 = vld [vmem:[%s1472 + $0x60] sm:$0xff]
    %v1486 = vld [vmem:[%s1472 + $0x68] sm:$0xff]
    %v1487 = vld [vmem:[%s1472 + $0x70] sm:$0xff]
    %v1488 = vld [vmem:[%s1472 + $0x78] sm:$0xff]
    %s1489 = scalar_lea.vmem %s3, 3
    %v1490 = vld [vmem:[%s1489] sm:$0x1]
    %v1492 = vlaneseq
    %v1493 = vshrl.u32 %v1492, 7
    %v1494 = vsub.s32 0, %v1493
    %v1495 = vrot.slane %v1490, %v1494
    %1497 = vmatprep.subr.mxu0 0.0
    %1498 = vmatpush1.msra.mxu0 %v1473
    %1499 = vmatprep.subr.mxu0 0.0
    %1500 = vmatpush1.msra.mxu0 %v1474
    %1501 = vmatprep.subr.mxu0 0.0
    %1502 = vmatpush1.msra.mxu0 %v1475
    %1503 = vmatprep.subr.mxu0 0.0
    %1504 = vmatpush1.msra.mxu0 %v1476
    %1505 = vmatprep.subr.mxu0 0.0
    %1506 = vmatpush1.msra.mxu0 %v1477
    %1507 = vmatprep.subr.mxu0 0.0
    %1508 = vmatpush1.msra.mxu0 %v1478
    %1509 = vmatprep.subr.mxu0 0.0
    %1510 = vmatpush1.msra.mxu0 %v1479
    %1511 = vmatprep.subr.mxu0 0.0
    %1512 = vmatpush1.msra.mxu0 %v1480
    %1513 = vmatprep.subr.mxu0 0.0
    %1514 = vmatpush1.msra.mxu0 %v1481
    %1515 = vmatprep.subr.mxu0 0.0
    %1516 = vmatpush1.msra.mxu0 %v1482
    %1517 = vmatprep.subr.mxu0 0.0
    %1518 = vmatpush1.msra.mxu0 %v1483
    %1519 = vmatprep.subr.mxu0 0.0
    %1520 = vmatpush1.msra.mxu0 %v1484
    %1521 = vmatprep.subr.mxu0 0.0
    %1522 = vmatpush1.msra.mxu0 %v1485
    %1523 = vmatprep.subr.mxu0 0.0
    %1524 = vmatpush1.msra.mxu0 %v1486
    %1525 = vmatprep.subr.mxu0 0.0
    %1526 = vmatpush1.msra.mxu0 %v1487
    %1527 = vmatprep.subr.mxu0 0.0
    %1528 = vmatpush1.msra.mxu0 %v1488
    %1529 = vmatprep.subr.mxu0 0.0
    %1530 = vmatpush1.msra.mxu0 0.0
    %1531 = vmatprep.subr.mxu0 0.0
    %1532 = vmatpush1.msra.mxu0 0.0
    %1533 = vmatprep.subr.mxu0 0.0
    %1534 = vmatpush1.msra.mxu0 0.0
    %1535 = vmatprep.subr.mxu0 0.0
    %1536 = vmatpush1.msra.mxu0 0.0
    %1537 = vmatprep.subr.mxu0 0.0
    %1538 = vmatpush1.msra.mxu0 0.0
    %1539 = vmatprep.subr.mxu0 0.0
    %1540 = vmatpush1.msra.mxu0 0.0
    %1541 = vmatprep.subr.mxu0 0.0
    %1542 = vmatpush1.msra.mxu0 0.0
    %1543 = vmatprep.subr.mxu0 0.0
    %1544 = vmatpush1.msra.mxu0 0.0
    %1545 = vmatprep.subr.mxu0 0.0
    %1546 = vmatpush1.msra.mxu0 0.0
    %1547 = vmatprep.subr.mxu0 0.0
    %1548 = vmatpush1.msra.mxu0 0.0
    %1549 = vmatprep.subr.mxu0 0.0
    %1550 = vmatpush1.msra.mxu0 0.0
    %1551 = vmatprep.subr.mxu0 0.0
    %1552 = vmatpush1.msra.mxu0 0.0
    %1553 = vmatprep.subr.mxu0 0.0
    %1554 = vmatpush1.msra.mxu0 0.0
    %1555 = vmatprep.subr.mxu0 0.0
    %1556 = vmatpush1.msra.mxu0 0.0
    %1557 = vmatprep.subr.mxu0 0.0
    %1558 = vmatpush1.msra.mxu0 0.0
    %1559 = vmatprep.subr.mxu0 0.0
    %1560 = vmatpush1.msra.mxu0 0.0
    %1561 = vmatprep.mubr.f32.mxu0 0.0
    %1562 = vmatmul.mubr.f32.gmra.mrb[0].mxu0 %v1468
    %v1563 = vpop.f32.mrb[0].mxu0
    %v1564 = vadd.f32 %v1495, %v1563
    %v1565 = vpop.f32.mrb[0].mxu0
    %1566 = vdwg.mxu0
    %v1567 = vmax.f32 %v1564, 0.0
    %s1568 = scalar_lea.vmem [#allocation7], 768
    %v1569 = vld [vmem:[%s1568] sm:$0xff]
    %v1570 = vld [vmem:[%s1568 + $0x8] sm:$0xff]
    %v1571 = vld [vmem:[%s1568 + $0x10] sm:$0xff]
    %v1572 = vld [vmem:[%s1568 + $0x18] sm:$0xff]
    %v1573 = vld [vmem:[%s1568 + $0x20] sm:$0xff]
    %v1574 = vld [vmem:[%s1568 + $0x28] sm:$0xff]
    %v1575 = vld [vmem:[%s1568 + $0x30] sm:$0xff]
    %v1576 = vld [vmem:[%s1568 + $0x38] sm:$0xff]
    %v1577 = vld [vmem:[%s1568 + $0x40] sm:$0xff]
    %v1578 = vld [vmem:[%s1568 + $0x48] sm:$0xff]
    %v1579 = vld [vmem:[%s1568 + $0x50] sm:$0xff]
    %v1580 = vld [vmem:[%s1568 + $0x58] sm:$0xff]
    %v1581 = vld [vmem:[%s1568 + $0x60] sm:$0xff]
    %v1582 = vld [vmem:[%s1568 + $0x68] sm:$0xff]
    %v1583 = vld [vmem:[%s1568 + $0x70] sm:$0xff]
    %v1584 = vld [vmem:[%s1568 + $0x78] sm:$0xff]
    %v1585 = vld [vmem:[%s1568 + $0x80] sm:$0xff]
    %v1586 = vld [vmem:[%s1568 + $0x88] sm:$0xff]
    %v1587 = vld [vmem:[%s1568 + $0x90] sm:$0xff]
    %v1588 = vld [vmem:[%s1568 + $0x98] sm:$0xff]
    %v1589 = vld [vmem:[%s1568 + $0xa0] sm:$0xff]
    %v1590 = vld [vmem:[%s1568 + $0xa8] sm:$0xff]
    %v1591 = vld [vmem:[%s1568 + $0xb0] sm:$0xff]
    %v1592 = vld [vmem:[%s1568 + $0xb8] sm:$0xff]
    %v1593 = vld [vmem:[%s1568 + $0xc0] sm:$0xff]
    %v1594 = vld [vmem:[%s1568 + $0xc8] sm:$0xff]
    %v1595 = vld [vmem:[%s1568 + $0xd0] sm:$0xff]
    %v1596 = vld [vmem:[%s1568 + $0xd8] sm:$0xff]
    %v1597 = vld [vmem:[%s1568 + $0xe0] sm:$0xff]
    %v1598 = vld [vmem:[%s1568 + $0xe8] sm:$0xff]
    %v1599 = vld [vmem:[%s1568 + $0xf0] sm:$0xff]
    %v1600 = vld [vmem:[%s1568 + $0xf8] sm:$0xff]
    %s1601 = scalar_lea.vmem %s5, 6
    %v1602 = vld [vmem:[%s1601] sm:$0x3]
    %v1604 = vlaneseq
    %v1605 = vshrl.u32 %v1604, 7
    %v1606 = vsub.s32 0, %v1605
    %v1607 = vrot.slane %v1602, %v1606
    %v1608 = vlaneseq
    %v1609 = vshrl.u32 %v1608, 7
    %v1610 = vsub.s32 1, %v1609
    %v1611 = vrot.slane %v1602, %v1610
    %1614 = vmatprep.subr.mxu0 %v1570
    %1615 = vmatpush1.msra.mxu0 %v1569
    %1616 = vmatprep.subr.mxu0 %v1572
    %1617 = vmatpush1.msra.mxu0 %v1571
    %1618 = vmatprep.subr.mxu0 %v1574
    %1619 = vmatpush1.msra.mxu0 %v1573
    %1620 = vmatprep.subr.mxu0 %v1576
    %1621 = vmatpush1.msra.mxu0 %v1575
    %1622 = vmatprep.subr.mxu0 %v1578
    %1623 = vmatpush1.msra.mxu0 %v1577
    %1624 = vmatprep.subr.mxu0 %v1580
    %1625 = vmatpush1.msra.mxu0 %v1579
    %1626 = vmatprep.subr.mxu0 %v1582
    %1627 = vmatpush1.msra.mxu0 %v1581
    %1628 = vmatprep.subr.mxu0 %v1584
    %1629 = vmatpush1.msra.mxu0 %v1583
    %1630 = vmatprep.subr.mxu0 %v1586
    %1631 = vmatpush1.msra.mxu0 %v1585
    %1632 = vmatprep.subr.mxu0 %v1588
    %1633 = vmatpush1.msra.mxu0 %v1587
    %1634 = vmatprep.subr.mxu0 %v1590
    %1635 = vmatpush1.msra.mxu0 %v1589
    %1636 = vmatprep.subr.mxu0 %v1592
    %1637 = vmatpush1.msra.mxu0 %v1591
    %1638 = vmatprep.subr.mxu0 %v1594
    %1639 = vmatpush1.msra.mxu0 %v1593
    %1640 = vmatprep.subr.mxu0 %v1596
    %1641 = vmatpush1.msra.mxu0 %v1595
    %1642 = vmatprep.subr.mxu0 %v1598
    %1643 = vmatpush1.msra.mxu0 %v1597
    %1644 = vmatprep.subr.mxu0 %v1600
    %1645 = vmatpush1.msra.mxu0 %v1599
    %1646 = vmatprep.subr.mxu0 0.0
    %1647 = vmatpush1.msra.mxu0 0.0
    %1648 = vmatprep.subr.mxu0 0.0
    %1649 = vmatpush1.msra.mxu0 0.0
    %1650 = vmatprep.subr.mxu0 0.0
    %1651 = vmatpush1.msra.mxu0 0.0
    %1652 = vmatprep.subr.mxu0 0.0
    %1653 = vmatpush1.msra.mxu0 0.0
    %1654 = vmatprep.subr.mxu0 0.0
    %1655 = vmatpush1.msra.mxu0 0.0
    %1656 = vmatprep.subr.mxu0 0.0
    %1657 = vmatpush1.msra.mxu0 0.0
    %1658 = vmatprep.subr.mxu0 0.0
    %1659 = vmatpush1.msra.mxu0 0.0
    %1660 = vmatprep.subr.mxu0 0.0
    %1661 = vmatpush1.msra.mxu0 0.0
    %1662 = vmatprep.subr.mxu0 0.0
    %1663 = vmatpush1.msra.mxu0 0.0
    %1664 = vmatprep.subr.mxu0 0.0
    %1665 = vmatpush1.msra.mxu0 0.0
    %1666 = vmatprep.subr.mxu0 0.0
    %1667 = vmatpush1.msra.mxu0 0.0
    %1668 = vmatprep.subr.mxu0 0.0
    %1669 = vmatpush1.msra.mxu0 0.0
    %1670 = vmatprep.subr.mxu0 0.0
    %1671 = vmatpush1.msra.mxu0 0.0
    %1672 = vmatprep.subr.mxu0 0.0
    %1673 = vmatpush1.msra.mxu0 0.0
    %1674 = vmatprep.subr.mxu0 0.0
    %1675 = vmatpush1.msra.mxu0 0.0
    %1676 = vmatprep.subr.mxu0 0.0
    %1677 = vmatpush1.msra.mxu0 0.0
    %1678 = vmatprep.mubr.f32.mxu0 0.0
    %1679 = vmatmul.mubr.f32.gmra.mrb[0].mxu0 %v1567
    %v1680 = vpop.f32.mrb[0].mxu0
    %v1681 = vadd.f32 %v1607, %v1680
    %v1682 = vpop.f32.mrb[0].mxu0
    %v1683 = vadd.f32 %v1611, %v1682
    %1684 = vdwg.mxu0
    %v1685 = vmul.f32 %v1681, %v459
    %v1686 = vtanh.pop %v1685
    %v1687 = vmul.f32 %v1686, 2.0
    %v1688 = vmul.f32 %v1687, 1.442695
    %v1689 = vpow.pop %v1688
    %v1690 = vmul.f32 %v1470, %v1689
    %v1691 = vadd.f32 %v1690, %v1683
    %1692 = vst [vmem:[#allocation8] sm:$0x3] %v1468
    %1693 = vst [vmem:[#allocation8 + $0x2] sm:$0x3] %v1691
    %v1694 = vld [vmem:[%s7] sm:$0x3]
    %v1695 = vsel %vm470, %v1687, 0.0
    %1696 = vadd.xlane.f32.xlu0 %v1695
    %v1697 = vpop.xlane.xlu0 %1696
    %v1698 = vadd.f32 %v1694, %v1697
    %1699 = vst.msk [vmem:[%s7] sm:$0x3] %vm69, %v1698
    // Predicated region
    $region38: #{my_model_forward.1} parent=1 // pred_check
      _
    $region39: #{my_model_forward.1} parent=1 // pred_check_branch
      %1701 = sbr.rel (0) target = $region41
    $region40: #{my_model_forward.1} parent=1 // pred_region
      %s1703 = ssub.s32 64, 64
      %1704 = vsyncadd [#allocation4], %s1703
      %s1706 = sshll.u32 [#allocation8], 4
      %s1707 = int_to_ptr.vmem [resolvable:$true] %s1706
      %1709 = dma.vmem_to_hbm [thread:$0]  %s1707, 64, %s6, [#allocation4]
    $region41: #{my_model_forward.1} parent=1 // pred_fallthru
      _
    // Predicated region
    $region42: #{my_model_forward.1} parent=1 // pred_check
      _
    $region43: #{my_model_forward.1} parent=1 // pred_check_branch
      %1711 = sbr.rel (0) target = $region45
    $region44: #{my_model_forward.1} parent=1 // pred_region
      _
    $region45: #{my_model_forward.1} parent=1 // pred_fallthru
      _
    // Predicated region
    $region46: #{my_model_forward.1} parent=1 // pred_check
      _
    $region47: #{my_model_forward.1} parent=1 // pred_check_branch
      %1713 = sbr.rel (0) target = $region49
    $region48: #{my_model_forward.1} parent=1 // pred_region
      %1714 = dma.done [#allocation4], 64
    $region49: #{my_model_forward.1} parent=1 // pred_fallthru
      _
    // Predicated region
    $region50: #{my_model_forward.1} parent=1 // pred_check
      _
    $region51: #{my_model_forward.1} parent=1 // pred_check_branch
      %1716 = sbr.rel (0) target = $region53
    $region52: #{my_model_forward.1} parent=1 // pred_region
      _
    $region53: #{my_model_forward.1} parent=1 // pred_fallthru
      _
    %1717 = vsyncpa [#allocation3], 1
    %1718 = vsyncpa [#allocation6], 1
    %1719 = vsyncpa [#allocation4], 1

</llo_original>
